<compile_context>
chip_gen: v7x
topology: tpu7x:2x2x1
jax: 0.10.0
libtpu: 0.0.40
codegen_flags: <defaults>
</compile_context>

<pallas_src>
import jax
import jax.numpy as jnp
from jax.experimental import pallas as pl
from jax.experimental.pallas import tpu as pltpu

NCLS = 8            # number of segmentation classes of the synthetic branch
HID = 32            # hidden width of the synthetic branch
IGNORE = 255        # CrossEntropyLoss ignore_index
MAX_HW_TILE = 8192  # pixels (lanes) per grid step; multiple of 128

MEAN = (0.485, 0.456, 0.406)
STD = (0.229, 0.224, 0.225)


def _round_up(x, m):
    return ((x + m - 1) // m) * m


def _fold_norm(params):
    """Fold Normalize((x-mean)/std) into the first 1x1 conv and pre-transpose
    weights to the (out, in) orientation used by the kernels (pixels on lanes)."""
    w1, b1, w2, b2 = params                       # (C,HID), (1,HID), (HID,NCLS), (1,NCLS)
    mean = jnp.asarray(MEAN, jnp.float32)
    istd = 1.0 / jnp.asarray(STD, jnp.float32)
    w1f = (w1 * istd[:, None]).T                  # (HID, C)
    b1f = (b1 - (mean * istd)[None, :] @ w1).T    # (HID, 1)
    w2f = w2.T                                    # (NCLS, HID)
    b2f = b2.T                                    # (NCLS, 1)
    return w1f, b1f, w2f, b2f


def _branch_logits(x_ct, w1, b1, w2, b2):
    """x_ct: (C, T) with pixels in the lane dim -> logits (NCLS, T)."""
    h = jnp.maximum(jnp.dot(w1, x_ct, preferred_element_type=jnp.float32) + b1, 0.0)
    return jnp.dot(w2, h, preferred_element_type=jnp.float32) + b2


# --------------------------------------------------------------------------
# forward_pseudo: (normalize folded) branch MLP -> argmax over classes
# --------------------------------------------------------------------------
def _pseudo_kernel(x_ref, w1_ref, b1_ref, w2_ref, b2_ref, o_ref):
    w1, b1, w2, b2 = w1_ref[...], b1_ref[...], w2_ref[...], b2_ref[...]
    x = x_ref[...]                                       # (B, C, T)
    B = x.shape[0]
    labs = []
    for b in range(B):                                   # small static batch loop
        logits = _branch_logits(x[b], w1, b1, w2, b2)    # (NCLS, T)
        # argmax with first-occurrence tie-breaking (matches torch.argmax)
        mx = jnp.max(logits, axis=0, keepdims=True)
        idx = jax.lax.broadcasted_iota(jnp.int32, logits.shape, 0)
        cand = jnp.where(logits == mx, idx, jnp.int32(NCLS))
        labs.append(jnp.min(cand, axis=0, keepdims=True))   # (1, T)
    o_ref[...] = jnp.concatenate(labs, axis=0)               # (B, T) lane-dense store


def _pseudo_labels_flat(folded, x_flat, tile):
    """x_flat: (B, C, HWp) float32, HWp a multiple of `tile`. Returns (B, HWp) int32."""
    B, C, HWp = x_flat.shape
    ntiles = HWp // tile
    w1f, b1f, w2f, b2f = folded
    full = lambda a: pl.BlockSpec(a.shape, lambda i, _nd=None, _a=a: (0,) * _a.ndim)
    return pl.pallas_call(
        _pseudo_kernel,
        out_shape=jax.ShapeDtypeStruct((B, HWp), jnp.int32),
        grid=(ntiles,),
        in_specs=[
            pl.BlockSpec((B, C, tile), lambda i: (0, 0, i)),
            full(w1f), full(b1f), full(w2f), full(b2f),
        ],
        out_specs=pl.BlockSpec((B, tile), lambda i: (0, i)),
        compiler_params=pltpu.CompilerParams(dimension_semantics=("parallel",)),
    )(x_flat, w1f, b1f, w2f, b2f)


# --------------------------------------------------------------------------
# forward_loss: fused CutMix mix + (normalize folded) branch MLP +
#               CrossEntropy(ignore_index=255) partial sums
# --------------------------------------------------------------------------
def _loss_kernel(x_ref, t_ref, m_ref, w1_ref, b1_ref, w2_ref, b2_ref,
                 lsum_ref, cnt_ref):
    @pl.when(pl.program_id(1) == 0)
    def _():
        lsum_ref[...] = jnp.zeros_like(lsum_ref)
        cnt_ref[...] = jnp.zeros_like(cnt_ref)

    w1, b1, w2, b2 = w1_ref[...], b1_ref[...], w2_ref[...], b2_ref[...]
    x = x_ref[...]                                  # (B2, C, T) float32
    t = t_ref[...]                                  # (B2, T)    int32
    m = m_ref[...]                                  # (B2, T)    float32 in {0,1}
    B2, _, T = x.shape
    half = B2 // 2

    loss_vec = jnp.zeros((1, T), jnp.float32)
    cnt_vec = jnp.zeros((1, T), jnp.float32)
    for b in range(B2):                             # small static batch loop
        br = (b + half) % B2                        # fused roll(shifts=B2//2, dims=0)
        mb = m[b:b + 1]                             # (1, T)
        xb = x[b] * mb + x[br] * (1.0 - mb)         # (C, T) fused image mix
        tb = jnp.where(mb > 0.5, t[b:b + 1], t[br:br + 1])   # (1, T) integer mix (binary mask)

        logits = _branch_logits(xb, w1, b1, w2, b2)           # (NCLS, T)
        mx = jnp.max(logits, axis=0, keepdims=True)
        lse = mx + jnp.log(jnp.sum(jnp.exp(logits - mx), axis=0, keepdims=True))
        idx = jax.lax.broadcasted_iota(jnp.int32, logits.shape, 0)
        logit_t = jnp.sum(jnp.where(idx == tb, logits, 0.0), axis=0, keepdims=True)
        valid = (tb != IGNORE).astype(jnp.float32)
        loss_vec = loss_vec + (lse - logit_t) * valid
        cnt_vec = cnt_vec + valid

    lsum_ref[...] += loss_vec[None, :, :]
    cnt_ref[...] += cnt_vec[None, :, :]


def _forward_loss(folded, x_flat, t_flat, m_flat, tile, nsplit):
    """x_flat: (B2, C, HWp) f32, t_flat: (B2, HWp) i32 (padding == IGNORE),
    m_flat: (B2, HWp) f32 binary. Mixing is fused into the kernel."""
    B2, C, HWp = x_flat.shape
    ntiles = HWp // tile
    tps = ntiles // nsplit
    w1f, b1f, w2f, b2f = folded
    full = lambda a: pl.BlockSpec(a.shape, lambda c, i, _a=a: (0,) * _a.ndim)
    lsum, cnt = pl.pallas_call(
        _loss_kernel,
        out_shape=(jax.ShapeDtypeStruct((nsplit, 1, tile), jnp.float32),
                   jax.ShapeDtypeStruct((nsplit, 1, tile), jnp.float32)),
        grid=(nsplit, tps),
        in_specs=[
            pl.BlockSpec((B2, C, tile), lambda c, i: (0, 0, c * tps + i)),
            pl.BlockSpec((B2, tile), lambda c, i: (0, c * tps + i)),
            pl.BlockSpec((B2, tile), lambda c, i: (0, c * tps + i)),
            full(w1f), full(b1f), full(w2f), full(b2f),
        ],
        out_specs=(pl.BlockSpec((1, 1, tile), lambda c, i: (c, 0, 0)),
                   pl.BlockSpec((1, 1, tile), lambda c, i: (c, 0, 0))),
        compiler_params=pltpu.CompilerParams(
            dimension_semantics=("parallel", "arbitrary")),
    )(x_flat, t_flat, m_flat, w1f, b1f, w2f, b2f)
    # CrossEntropyLoss(reduction='mean', ignore_index=255)
    return jnp.sum(lsum) / jnp.sum(cnt)


# --------------------------------------------------------------------------
# forward_train (the module's training forward)
# --------------------------------------------------------------------------
def forward_train(params1, params2, inp, target, mask, input_u, mask_u):
    f1 = _fold_norm(params1)   # branch_one (+ folded Normalize)
    f2 = _fold_norm(params2)   # branch_two (+ folded Normalize)

    B, C, H, W = inp.shape
    HW = H * W
    tile = min(MAX_HW_TILE, _round_up(HW, 128))
    HWp = _round_up(HW, tile)
    pad = HWp - HW

    # ---- pseudo labels from the unlabeled images (padded input shared) ----
    xu = input_u.reshape(B, C, HW)
    if pad:
        xu = jnp.pad(xu, ((0, 0), (0, 0), (0, pad)))
    pseudo_one = _pseudo_labels_flat(f1, xu, tile)          # (B, HWp) int32
    pseudo_two = _pseudo_labels_flat(f2, xu, tile)
    if pad:  # padded pixels must never count as valid targets
        pseudo_one = pseudo_one.at[:, HW:].set(IGNORE)
        pseudo_two = pseudo_two.at[:, HW:].set(IGNORE)

    # ---- branch-independent glue, hoisted & done once ----
    x_cat = jnp.concatenate([inp, input_u], axis=0).reshape(2 * B, C, HW)
    m_cat = jnp.concatenate([mask, mask_u], axis=0).reshape(2 * B, HW).astype(jnp.float32)
    t_lab = target.reshape(B, HW).astype(jnp.int32)
    if pad:
        x_cat = jnp.pad(x_cat, ((0, 0), (0, 0), (0, pad)))
        m_cat = jnp.pad(m_cat, ((0, 0), (0, pad)))
        t_lab = jnp.pad(t_lab, ((0, 0), (0, pad)), constant_values=IGNORE)

    t_cat_one = jnp.concatenate([t_lab, pseudo_two], axis=0)   # (2B, HWp)
    t_cat_two = jnp.concatenate([t_lab, pseudo_one], axis=0)

    # 2-way leading "parallel" split of the loss reduction for v7x megacore
    ntiles = HWp // tile
    nsplit = 2 if (ntiles >= 2 and ntiles % 2 == 0) else 1

    seg_loss_one = _forward_loss(f1, x_cat, t_cat_one, m_cat, tile, nsplit)
    seg_loss_two = _forward_loss(f2, x_cat, t_cat_two, m_cat, tile, nsplit)
    return dict(seg_loss=seg_loss_one + seg_loss_two)


def _init_branch(key):
    k1, k2, k3, k4 = jax.random.split(key, 4)
    w1 = 0.1 * jax.random.normal(k1, (3, HID), jnp.float32)
    b1 = 0.1 * jax.random.normal(k2, (1, HID), jnp.float32)
    w2 = 0.1 * jax.random.normal(k3, (HID, NCLS), jnp.float32)
    b2 = 0.1 * jax.random.normal(k4, (1, NCLS), jnp.float32)
    return (w1, b1, w2, b2)


if __name__ == "__main__":
    key = jax.random.PRNGKey(0)
    kp1, kp2, kx, kxu, kt, kign, km, kmu = jax.random.split(key, 8)

    B, C, H, W = 2, 3, 16, 16
    params1 = _init_branch(kp1)     # branch_one
    params2 = _init_branch(kp2)     # branch_two

    x = jax.random.uniform(kx, (B, C, H, W), jnp.float32)          # labeled images
    x_u = jax.random.uniform(kxu, (B, C, H, W), jnp.float32)       # unlabeled images
    tgt = jax.random.randint(kt, (B, H, W), 0, NCLS).astype(jnp.int32)
    tgt = jnp.where(jax.random.uniform(kign, (B, H, W)) < 0.1, IGNORE, tgt)
    mask = (jax.random.uniform(km, (B, H, W)) < 0.5).astype(jnp.float32)
    mask_u = (jax.random.uniform(kmu, (B, H, W)) < 0.5).astype(jnp.float32)

    out = jax.jit(forward_train)(params1, params2, x, tgt, mask, x_u, mask_u)
    out = jax.tree_util.tree_map(jax.block_until_ready, out)
    assert bool(jnp.isfinite(out["seg_loss"]))
    print("KERNEL_OK")
</pallas_src>

<mosaic_0001>
module attributes {stable_mosaic.version = 11 : i64} {
  func.func @_pseudo_kernel(%arg0: i32, %arg1: memref<2x3x256xf32, #tpu.memory_space<vmem>>, %arg2: memref<32x3xf32, #tpu.memory_space<vmem>>, %arg3: memref<32x1xf32, #tpu.memory_space<vmem>>, %arg4: memref<8x32xf32, #tpu.memory_space<vmem>>, %arg5: memref<8x1xf32, #tpu.memory_space<vmem>>, %arg6: memref<2x256xi32, #tpu.memory_space<vmem>>) attributes {dimension_semantics = [#tpu.dimension_semantics<parallel>], iteration_bounds = array<i64: 1>, scalar_prefetch = 0 : i64, scratch_operands = 0 : i64, tpu.core_type = #tpu.core_type<tc>, window_params = [{transform_indices = @transform_0, window_bounds = array<i64: 2, 3, 256>}, {pipeline_mode = #tpu.pipeline_mode<synchronous>, transform_indices = @transform_1, window_bounds = array<i64: 32, 3>}, {pipeline_mode = #tpu.pipeline_mode<synchronous>, transform_indices = @transform_2, window_bounds = array<i64: 32, 1>}, {pipeline_mode = #tpu.pipeline_mode<synchronous>, transform_indices = @transform_3, window_bounds = array<i64: 8, 32>}, {pipeline_mode = #tpu.pipeline_mode<synchronous>, transform_indices = @transform_4, window_bounds = array<i64: 8, 1>}, {transform_indices = @transform_5, window_bounds = array<i64: 2, 256>}]} {
    %c0 = arith.constant 0 : index
    %c0_0 = arith.constant 0 : index
    %0 = vector.load %arg2[%c0, %c0_0] : memref<32x3xf32, #tpu.memory_space<vmem>>, vector<32x3xf32>
    %c0_1 = arith.constant 0 : index
    %c0_2 = arith.constant 0 : index
    %1 = vector.load %arg3[%c0_1, %c0_2] : memref<32x1xf32, #tpu.memory_space<vmem>>, vector<32x1xf32>
    %c0_3 = arith.constant 0 : index
    %c0_4 = arith.constant 0 : index
    %2 = vector.load %arg4[%c0_3, %c0_4] : memref<8x32xf32, #tpu.memory_space<vmem>>, vector<8x32xf32>
    %c0_5 = arith.constant 0 : index
    %c0_6 = arith.constant 0 : index
    %3 = vector.load %arg5[%c0_5, %c0_6] : memref<8x1xf32, #tpu.memory_space<vmem>>, vector<8x1xf32>
    %c0_7 = arith.constant 0 : index
    %c0_8 = arith.constant 0 : index
    %c0_9 = arith.constant 0 : index
    %4 = vector.load %arg1[%c0_7, %c0_8, %c0_9] : memref<2x3x256xf32, #tpu.memory_space<vmem>>, vector<2x3x256xf32>
    %5 = vector.extract_strided_slice %4 {offsets = [0, 0, 0], sizes = [1, 3, 256], strides = [1, 1, 1]} : vector<2x3x256xf32> to vector<1x3x256xf32>
    %6 = vector.shape_cast %5 : vector<1x3x256xf32> to vector<3x256xf32>
    %cst = arith.constant dense<0.000000e+00> : vector<32x256xf32>
    %7 = tpu.matmul %0, %6, %cst {dimension_numbers = #tpu.dot_dimension_numbers<[1], [0], [0], [1], [0, 0, 1, 1], [], []>} : vector<32x3xf32>, vector<3x256xf32>, vector<32x256xf32> -> vector<32x256xf32>
    %8 = vector.broadcast %1 : vector<32x1xf32> to vector<32x256xf32>
    %9 = arith.addf %7, %8 : vector<32x256xf32>
    %cst_10 = arith.constant 0.000000e+00 : f32
    %10 = vector.broadcast %cst_10 : f32 to vector<32x256xf32>
    %11 = arith.maximumf %9, %10 : vector<32x256xf32>
    %cst_11 = arith.constant dense<0.000000e+00> : vector<8x256xf32>
    %12 = tpu.matmul %2, %11, %cst_11 {dimension_numbers = #tpu.dot_dimension_numbers<[1], [0], [0], [1], [0, 0, 1, 1], [], []>} : vector<8x32xf32>, vector<32x256xf32>, vector<8x256xf32> -> vector<8x256xf32>
    %13 = vector.broadcast %3 : vector<8x1xf32> to vector<8x256xf32>
    %14 = arith.addf %12, %13 : vector<8x256xf32>
    %cst_12 = arith.constant dense<0xFF800000> : vector<256xf32>
    %15 = vector.multi_reduction <maximumf>, %14, %cst_12 [0] : vector<8x256xf32> to vector<256xf32>
    %16 = vector.shape_cast %15 : vector<256xf32> to vector<1x256xf32>
    %17 = tpu.iota {dimensions = array<i32: 0>} : vector<8x256xi32>
    %18 = vector.broadcast %16 : vector<1x256xf32> to vector<8x256xf32>
    %19 = arith.cmpf oeq, %14, %18 : vector<8x256xf32>
    %c8_i32 = arith.constant 8 : i32
    %20 = vector.broadcast %c8_i32 : i32 to vector<8x256xi32>
    %21 = arith.select %19, %17, %20 : vector<8x256xi1>, vector<8x256xi32>
    %cst_13 = arith.constant dense<2147483647> : vector<256xi32>
    %22 = vector.multi_reduction <minsi>, %21, %cst_13 [0] : vector<8x256xi32> to vector<256xi32>
    %23 = vector.shape_cast %22 : vector<256xi32> to vector<1x256xi32>
    %24 = vector.extract_strided_slice %4 {offsets = [1, 0, 0], sizes = [1, 3, 256], strides = [1, 1, 1]} : vector<2x3x256xf32> to vector<1x3x256xf32>
    %25 = vector.shape_cast %24 : vector<1x3x256xf32> to vector<3x256xf32>
    %cst_14 = arith.constant dense<0.000000e+00> : vector<32x256xf32>
    %26 = tpu.matmul %0, %25, %cst_14 {dimension_numbers = #tpu.dot_dimension_numbers<[1], [0], [0], [1], [0, 0, 1, 1], [], []>} : vector<32x3xf32>, vector<3x256xf32>, vector<32x256xf32> -> vector<32x256xf32>
    %27 = vector.broadcast %1 : vector<32x1xf32> to vector<32x256xf32>
    %28 = arith.addf %26, %27 : vector<32x256xf32>
    %cst_15 = arith.constant 0.000000e+00 : f32
    %29 = vector.broadcast %cst_15 : f32 to vector<32x256xf32>
    %30 = arith.maximumf %28, %29 : vector<32x256xf32>
    %cst_16 = arith.constant dense<0.000000e+00> : vector<8x256xf32>
    %31 = tpu.matmul %2, %30, %cst_16 {dimension_numbers = #tpu.dot_dimension_numbers<[1], [0], [0], [1], [0, 0, 1, 1], [], []>} : vector<8x32xf32>, vector<32x256xf32>, vector<8x256xf32> -> vector<8x256xf32>
    %32 = vector.broadcast %3 : vector<8x1xf32> to vector<8x256xf32>
    %33 = arith.addf %31, %32 : vector<8x256xf32>
    %cst_17 = arith.constant dense<0xFF800000> : vector<256xf32>
    %34 = vector.multi_reduction <maximumf>, %33, %cst_17 [0] : vector<8x256xf32> to vector<256xf32>
    %35 = vector.shape_cast %34 : vector<256xf32> to vector<1x256xf32>
    %36 = tpu.iota {dimensions = array<i32: 0>} : vector<8x256xi32>
    %37 = vector.broadcast %35 : vector<1x256xf32> to vector<8x256xf32>
    %38 = arith.cmpf oeq, %33, %37 : vector<8x256xf32>
    %c8_i32_18 = arith.constant 8 : i32
    %39 = vector.broadcast %c8_i32_18 : i32 to vector<8x256xi32>
    %40 = arith.select %38, %36, %39 : vector<8x256xi1>, vector<8x256xi32>
    %cst_19 = arith.constant dense<2147483647> : vector<256xi32>
    %41 = vector.multi_reduction <minsi>, %40, %cst_19 [0] : vector<8x256xi32> to vector<256xi32>
    %42 = vector.shape_cast %41 : vector<256xi32> to vector<1x256xi32>
    %43 = tpu.concatenate %23, %42 in 0 : vector<1x256xi32>, vector<1x256xi32> -> vector<2x256xi32>
    %c0_20 = arith.constant 0 : index
    %c0_21 = arith.constant 0 : index
    %44 = vector.load %arg6[%c0_20, %c0_21] : memref<2x256xi32, #tpu.memory_space<vmem>>, vector<2x256xi32>
    tpu.vector_store %arg6[%c0_20, %c0_21], %43 {strides = array<i32>} : memref<2x256xi32, #tpu.memory_space<vmem>>, vector<2x256xi32>,
    return
  }
  func.func @transform_0(%arg0: i32) -> (i32, i32, i32) {
    %c0_i32 = arith.constant 0 : i32
    %c0_i32_0 = arith.constant 0 : i32
    %c0_i32_1 = arith.constant 0 : i32
    return %c0_i32, %c0_i32_0, %arg0 : i32, i32, i32
  }
  func.func @transform_1(%arg0: i32) -> (i32, i32) {
    %c0_i32 = arith.constant 0 : i32
    %c0_i32_0 = arith.constant 0 : i32
    %c0_i32_1 = arith.constant 0 : i32
    return %c0_i32, %c0_i32_0 : i32, i32
  }
  func.func @transform_2(%arg0: i32) -> (i32, i32) {
    %c0_i32 = arith.constant 0 : i32
    %c0_i32_0 = arith.constant 0 : i32
    %c0_i32_1 = arith.constant 0 : i32
    return %c0_i32, %c0_i32_0 : i32, i32
  }
  func.func @transform_3(%arg0: i32) -> (i32, i32) {
    %c0_i32 = arith.constant 0 : i32
    %c0_i32_0 = arith.constant 0 : i32
    %c0_i32_1 = arith.constant 0 : i32
    return %c0_i32, %c0_i32_0 : i32, i32
  }
  func.func @transform_4(%arg0: i32) -> (i32, i32) {
    %c0_i32 = arith.constant 0 : i32
    %c0_i32_0 = arith.constant 0 : i32
    %c0_i32_1 = arith.constant 0 : i32
    return %c0_i32, %c0_i32_0 : i32, i32
  }
  func.func @transform_5(%arg0: i32) -> (i32, i32) {
    %c0_i32 = arith.constant 0 : i32
    %c0_i32_0 = arith.constant 0 : i32
    return %c0_i32, %arg0 : i32, i32
  }
}

module attributes {stable_mosaic.version = 11 : i64} {
  func.func @_loss_kernel(%arg0: i32, %arg1: i32, %arg2: memref<4x3x256xf32, #tpu.memory_space<vmem>>, %arg3: memref<4x256xi32, #tpu.memory_space<vmem>>, %arg4: memref<4x256xf32, #tpu.memory_space<vmem>>, %arg5: memref<32x3xf32, #tpu.memory_space<vmem>>, %arg6: memref<32x1xf32, #tpu.memory_space<vmem>>, %arg7: memref<8x32xf32, #tpu.memory_space<vmem>>, %arg8: memref<8x1xf32, #tpu.memory_space<vmem>>, %arg9: memref<1x1x256xf32, #tpu.memory_space<vmem>>, %arg10: memref<1x1x256xf32, #tpu.memory_space<vmem>>) attributes {dimension_semantics = [#tpu.dimension_semantics<parallel>, #tpu.dimension_semantics<arbitrary>], iteration_bounds = array<i64: 1, 1>, scalar_prefetch = 0 : i64, scratch_operands = 0 : i64, tpu.core_type = #tpu.core_type<tc>, window_params = [{transform_indices = @transform_0, window_bounds = array<i64: 4, 3, 256>}, {transform_indices = @transform_1, window_bounds = array<i64: 4, 256>}, {transform_indices = @transform_2, window_bounds = array<i64: 4, 256>}, {pipeline_mode = #tpu.pipeline_mode<synchronous>, transform_indices = @transform_3, window_bounds = array<i64: 32, 3>}, {pipeline_mode = #tpu.pipeline_mode<synchronous>, transform_indices = @transform_4, window_bounds = array<i64: 32, 1>}, {pipeline_mode = #tpu.pipeline_mode<synchronous>, transform_indices = @transform_5, window_bounds = array<i64: 8, 32>}, {pipeline_mode = #tpu.pipeline_mode<synchronous>, transform_indices = @transform_6, window_bounds = array<i64: 8, 1>}, {transform_indices = @transform_7, window_bounds = array<i64: 1, 1, 256>}, {transform_indices = @transform_8, window_bounds = array<i64: 1, 1, 256>}]} {
    %c0_i32 = arith.constant 0 : i32
    %0 = arith.cmpi eq, %arg1, %c0_i32 : i32
    %1 = arith.extui %0 : i1 to i32
    %c0_i32_0 = arith.constant 0 : i32
    %2 = arith.cmpi ne, %1, %c0_i32_0 : i32
    scf.if %2 {
      %cst_67 = arith.constant 0.000000e+00 : f32
      %216 = vector.broadcast %cst_67 : f32 to vector<1x1x256xf32>
      %c0_68 = arith.constant 0 : index
      %c0_69 = arith.constant 0 : index
      %c0_70 = arith.constant 0 : index
      %217 = vector.load %arg9[%c0_68, %c0_69, %c0_70] : memref<1x1x256xf32, #tpu.memory_space<vmem>>, vector<1x1x256xf32>
      tpu.vector_store %arg9[%c0_68, %c0_69, %c0_70], %216 {strides = array<i32>} : memref<1x1x256xf32, #tpu.memory_space<vmem>>, vector<1x1x256xf32>,
      %cst_71 = arith.constant 0.000000e+00 : f32
      %218 = vector.broadcast %cst_71 : f32 to vector<1x1x256xf32>
      %c0_72 = arith.constant 0 : index
      %c0_73 = arith.constant 0 : index
      %c0_74 = arith.constant 0 : index
      %219 = vector.load %arg10[%c0_72, %c0_73, %c0_74] : memref<1x1x256xf32, #tpu.memory_space<vmem>>, vector<1x1x256xf32>
      tpu.vector_store %arg10[%c0_72, %c0_73, %c0_74], %218 {strides = array<i32>} : memref<1x1x256xf32, #tpu.memory_space<vmem>>, vector<1x1x256xf32>,
    } else {
    }
    %c0 = arith.constant 0 : index
    %c0_1 = arith.constant 0 : index
    %3 = vector.load %arg5[%c0, %c0_1] : memref<32x3xf32, #tpu.memory_space<vmem>>, vector<32x3xf32>
    %c0_2 = arith.constant 0 : index
    %c0_3 = arith.constant 0 : index
    %4 = vector.load %arg6[%c0_2, %c0_3] : memref<32x1xf32, #tpu.memory_space<vmem>>, vector<32x1xf32>
    %c0_4 = arith.constant 0 : index
    %c0_5 = arith.constant 0 : index
    %5 = vector.load %arg7[%c0_4, %c0_5] : memref<8x32xf32, #tpu.memory_space<vmem>>, vector<8x32xf32>
    %c0_6 = arith.constant 0 : index
    %c0_7 = arith.constant 0 : index
    %6 = vector.load %arg8[%c0_6, %c0_7] : memref<8x1xf32, #tpu.memory_space<vmem>>, vector<8x1xf32>
    %c0_8 = arith.constant 0 : index
    %c0_9 = arith.constant 0 : index
    %c0_10 = arith.constant 0 : index
    %7 = vector.load %arg2[%c0_8, %c0_9, %c0_10] : memref<4x3x256xf32, #tpu.memory_space<vmem>>, vector<4x3x256xf32>
    %c0_11 = arith.constant 0 : index
    %c0_12 = arith.constant 0 : index
    %8 = vector.load %arg3[%c0_11, %c0_12] : memref<4x256xi32, #tpu.memory_space<vmem>>, vector<4x256xi32>
    %c0_13 = arith.constant 0 : index
    %c0_14 = arith.constant 0 : index
    %9 = vector.load %arg4[%c0_13, %c0_14] : memref<4x256xf32, #tpu.memory_space<vmem>>, vector<4x256xf32>
    %cst = arith.constant 0.000000e+00 : f32
    %10 = vector.broadcast %cst : f32 to vector<1x256xf32>
    %cst_15 = arith.constant 0.000000e+00 : f32
    %11 = vector.broadcast %cst_15 : f32 to vector<1x256xf32>
    %12 = vector.extract_strided_slice %9 {offsets = [0, 0], sizes = [1, 256], strides = [1, 1]} : vector<4x256xf32> to vector<1x256xf32>
    %13 = vector.extract_strided_slice %7 {offsets = [0, 0, 0], sizes = [1, 3, 256], strides = [1, 1, 1]} : vector<4x3x256xf32> to vector<1x3x256xf32>
    %14 = vector.shape_cast %13 : vector<1x3x256xf32> to vector<3x256xf32>
    %15 = vector.broadcast %12 : vector<1x256xf32> to vector<3x256xf32>
    %16 = arith.mulf %14, %15 : vector<3x256xf32>
    %17 = vector.extract_strided_slice %7 {offsets = [2, 0, 0], sizes = [1, 3, 256], strides = [1, 1, 1]} : vector<4x3x256xf32> to vector<1x3x256xf32>
    %18 = vector.shape_cast %17 : vector<1x3x256xf32> to vector<3x256xf32>
    %cst_16 = arith.constant 1.000000e+00 : f32
    %19 = vector.broadcast %cst_16 : f32 to vector<1x256xf32>
    %20 = arith.subf %19, %12 : vector<1x256xf32>
    %21 = vector.broadcast %20 : vector<1x256xf32> to vector<3x256xf32>
    %22 = arith.mulf %18, %21 : vector<3x256xf32>
    %23 = arith.addf %16, %22 : vector<3x256xf32>
    %cst_17 = arith.constant 5.000000e-01 : f32
    %24 = vector.broadcast %cst_17 : f32 to vector<1x256xf32>
    %25 = arith.cmpf ogt, %12, %24 : vector<1x256xf32>
    %26 = vector.extract_strided_slice %8 {offsets = [0, 0], sizes = [1, 256], strides = [1, 1]} : vector<4x256xi32> to vector<1x256xi32>
    %27 = vector.extract_strided_slice %8 {offsets = [2, 0], sizes = [1, 256], strides = [1, 1]} : vector<4x256xi32> to vector<1x256xi32>
    %28 = arith.select %25, %26, %27 : vector<1x256xi1>, vector<1x256xi32>
    %cst_18 = arith.constant dense<0.000000e+00> : vector<32x256xf32>
    %29 = tpu.matmul %3, %23, %cst_18 {dimension_numbers = #tpu.dot_dimension_numbers<[1], [0], [0], [1], [0, 0, 1, 1], [], []>} : vector<32x3xf32>, vector<3x256xf32>, vector<32x256xf32> -> vector<32x256xf32>
    %30 = vector.broadcast %4 : vector<32x1xf32> to vector<32x256xf32>
    %31 = arith.addf %29, %30 : vector<32x256xf32>
    %cst_19 = arith.constant 0.000000e+00 : f32
    %32 = vector.broadcast %cst_19 : f32 to vector<32x256xf32>
    %33 = arith.maximumf %31, %32 : vector<32x256xf32>
    %cst_20 = arith.constant dense<0.000000e+00> : vector<8x256xf32>
    %34 = tpu.matmul %5, %33, %cst_20 {dimension_numbers = #tpu.dot_dimension_numbers<[1], [0], [0], [1], [0, 0, 1, 1], [], []>} : vector<8x32xf32>, vector<32x256xf32>, vector<8x256xf32> -> vector<8x256xf32>
    %35 = vector.broadcast %6 : vector<8x1xf32> to vector<8x256xf32>
    %36 = arith.addf %34, %35 : vector<8x256xf32>
    %cst_21 = arith.constant dense<0xFF800000> : vector<256xf32>
    %37 = vector.multi_reduction <maximumf>, %36, %cst_21 [0] : vector<8x256xf32> to vector<256xf32>
    %38 = vector.shape_cast %37 : vector<256xf32> to vector<1x256xf32>
    %39 = vector.broadcast %38 : vector<1x256xf32> to vector<8x256xf32>
    %40 = arith.subf %36, %39 : vector<8x256xf32>
    %41 = math.exp %40 : vector<8x256xf32>
    %cst_22 = arith.constant dense<0.000000e+00> : vector<256xf32>
    %42 = vector.multi_reduction <add>, %41, %cst_22 [0] : vector<8x256xf32> to vector<256xf32>
    %43 = vector.shape_cast %42 : vector<256xf32> to vector<1x256xf32>
    %44 = math.log %43 : vector<1x256xf32>
    %45 = arith.addf %38, %44 : vector<1x256xf32>
    %46 = tpu.iota {dimensions = array<i32: 0>} : vector<8x256xi32>
    %47 = vector.broadcast %28 : vector<1x256xi32> to vector<8x256xi32>
    %48 = arith.cmpi eq, %46, %47 : vector<8x256xi32>
    %cst_23 = arith.constant 0.000000e+00 : f32
    %49 = vector.broadcast %cst_23 : f32 to vector<8x256xf32>
    %50 = arith.select %48, %36, %49 : vector<8x256xi1>, vector<8x256xf32>
    %cst_24 = arith.constant dense<0.000000e+00> : vector<256xf32>
    %51 = vector.multi_reduction <add>, %50, %cst_24 [0] : vector<8x256xf32> to vector<256xf32>
    %52 = vector.shape_cast %51 : vector<256xf32> to vector<1x256xf32>
    %c255_i32 = arith.constant 255 : i32
    %53 = vector.broadcast %c255_i32 : i32 to vector<1x256xi32>
    %54 = arith.cmpi ne, %28, %53 : vector<1x256xi32>
    %55 = arith.extui %54 : vector<1x256xi1> to vector<1x256xi32>
    %56 = arith.sitofp %55 : vector<1x256xi32> to vector<1x256xf32>
    %57 = arith.subf %45, %52 : vector<1x256xf32>
    %58 = arith.mulf %57, %56 : vector<1x256xf32>
    %59 = arith.addf %10, %58 : vector<1x256xf32>
    %60 = arith.addf %11, %56 : vector<1x256xf32>
    %61 = vector.extract_strided_slice %9 {offsets = [1, 0], sizes = [1, 256], strides = [1, 1]} : vector<4x256xf32> to vector<1x256xf32>
    %62 = vector.extract_strided_slice %7 {offsets = [1, 0, 0], sizes = [1, 3, 256], strides = [1, 1, 1]} : vector<4x3x256xf32> to vector<1x3x256xf32>
    %63 = vector.shape_cast %62 : vector<1x3x256xf32> to vector<3x256xf32>
    %64 = vector.broadcast %61 : vector<1x256xf32> to vector<3x256xf32>
    %65 = arith.mulf %63, %64 : vector<3x256xf32>
    %66 = vector.extract_strided_slice %7 {offsets = [3, 0, 0], sizes = [1, 3, 256], strides = [1, 1, 1]} : vector<4x3x256xf32> to vector<1x3x256xf32>
    %67 = vector.shape_cast %66 : vector<1x3x256xf32> to vector<3x256xf32>
    %cst_25 = arith.constant 1.000000e+00 : f32
    %68 = vector.broadcast %cst_25 : f32 to vector<1x256xf32>
    %69 = arith.subf %68, %61 : vector<1x256xf32>
    %70 = vector.broadcast %69 : vector<1x256xf32> to vector<3x256xf32>
    %71 = arith.mulf %67, %70 : vector<3x256xf32>
    %72 = arith.addf %65, %71 : vector<3x256xf32>
    %cst_26 = arith.constant 5.000000e-01 : f32
    %73 = vector.broadcast %cst_26 : f32 to vector<1x256xf32>
    %74 = arith.cmpf ogt, %61, %73 : vector<1x256xf32>
    %75 = vector.extract_strided_slice %8 {offsets = [1, 0], sizes = [1, 256], strides = [1, 1]} : vector<4x256xi32> to vector<1x256xi32>
    %76 = vector.extract_strided_slice %8 {offsets = [3, 0], sizes = [1, 256], strides = [1, 1]} : vector<4x256xi32> to vector<1x256xi32>
    %77 = arith.select %74, %75, %76 : vector<1x256xi1>, vector<1x256xi32>
    %cst_27 = arith.constant dense<0.000000e+00> : vector<32x256xf32>
    %78 = tpu.matmul %3, %72, %cst_27 {dimension_numbers = #tpu.dot_dimension_numbers<[1], [0], [0], [1], [0, 0, 1, 1], [], []>} : vector<32x3xf32>, vector<3x256xf32>, vector<32x256xf32> -> vector<32x256xf32>
    %79 = vector.broadcast %4 : vector<32x1xf32> to vector<32x256xf32>
    %80 = arith.addf %78, %79 : vector<32x256xf32>
    %cst_28 = arith.constant 0.000000e+00 : f32
    %81 = vector.broadcast %cst_28 : f32 to vector<32x256xf32>
    %82 = arith.maximumf %80, %81 : vector<32x256xf32>
    %cst_29 = arith.constant dense<0.000000e+00> : vector<8x256xf32>
    %83 = tpu.matmul %5, %82, %cst_29 {dimension_numbers = #tpu.dot_dimension_numbers<[1], [0], [0], [1], [0, 0, 1, 1], [], []>} : vector<8x32xf32>, vector<32x256xf32>, vector<8x256xf32> -> vector<8x256xf32>
    %84 = vector.broadcast %6 : vector<8x1xf32> to vector<8x256xf32>
    %85 = arith.addf %83, %84 : vector<8x256xf32>
    %cst_30 = arith.constant dense<0xFF800000> : vector<256xf32>
    %86 = vector.multi_reduction <maximumf>, %85, %cst_30 [0] : vector<8x256xf32> to vector<256xf32>
    %87 = vector.shape_cast %86 : vector<256xf32> to vector<1x256xf32>
    %88 = vector.broadcast %87 : vector<1x256xf32> to vector<8x256xf32>
    %89 = arith.subf %85, %88 : vector<8x256xf32>
    %90 = math.exp %89 : vector<8x256xf32>
    %cst_31 = arith.constant dense<0.000000e+00> : vector<256xf32>
    %91 = vector.multi_reduction <add>, %90, %cst_31 [0] : vector<8x256xf32> to vector<256xf32>
    %92 = vector.shape_cast %91 : vector<256xf32> to vector<1x256xf32>
    %93 = math.log %92 : vector<1x256xf32>
    %94 = arith.addf %87, %93 : vector<1x256xf32>
    %95 = tpu.iota {dimensions = array<i32: 0>} : vector<8x256xi32>
    %96 = vector.broadcast %77 : vector<1x256xi32> to vector<8x256xi32>
    %97 = arith.cmpi eq, %95, %96 : vector<8x256xi32>
    %cst_32 = arith.constant 0.000000e+00 : f32
    %98 = vector.broadcast %cst_32 : f32 to vector<8x256xf32>
    %99 = arith.select %97, %85, %98 : vector<8x256xi1>, vector<8x256xf32>
    %cst_33 = arith.constant dense<0.000000e+00> : vector<256xf32>
    %100 = vector.multi_reduction <add>, %99, %cst_33 [0] : vector<8x256xf32> to vector<256xf32>
    %101 = vector.shape_cast %100 : vector<256xf32> to vector<1x256xf32>
    %c255_i32_34 = arith.constant 255 : i32
    %102 = vector.broadcast %c255_i32_34 : i32 to vector<1x256xi32>
    %103 = arith.cmpi ne, %77, %102 : vector<1x256xi32>
    %104 = arith.extui %103 : vector<1x256xi1> to vector<1x256xi32>
    %105 = arith.sitofp %104 : vector<1x256xi32> to vector<1x256xf32>
    %106 = arith.subf %94, %101 : vector<1x256xf32>
    %107 = arith.mulf %106, %105 : vector<1x256xf32>
    %108 = arith.addf %59, %107 : vector<1x256xf32>
    %109 = arith.addf %60, %105 : vector<1x256xf32>
    %110 = vector.extract_strided_slice %9 {offsets = [2, 0], sizes = [1, 256], strides = [1, 1]} : vector<4x256xf32> to vector<1x256xf32>
    %111 = vector.extract_strided_slice %7 {offsets = [2, 0, 0], sizes = [1, 3, 256], strides = [1, 1, 1]} : vector<4x3x256xf32> to vector<1x3x256xf32>
    %112 = vector.shape_cast %111 : vector<1x3x256xf32> to vector<3x256xf32>
    %113 = vector.broadcast %110 : vector<1x256xf32> to vector<3x256xf32>
    %114 = arith.mulf %112, %113 : vector<3x256xf32>
    %115 = vector.extract_strided_slice %7 {offsets = [0, 0, 0], sizes = [1, 3, 256], strides = [1, 1, 1]} : vector<4x3x256xf32> to vector<1x3x256xf32>
    %116 = vector.shape_cast %115 : vector<1x3x256xf32> to vector<3x256xf32>
    %cst_35 = arith.constant 1.000000e+00 : f32
    %117 = vector.broadcast %cst_35 : f32 to vector<1x256xf32>
    %118 = arith.subf %117, %110 : vector<1x256xf32>
    %119 = vector.broadcast %118 : vector<1x256xf32> to vector<3x256xf32>
    %120 = arith.mulf %116, %119 : vector<3x256xf32>
    %121 = arith.addf %114, %120 : vector<3x256xf32>
    %cst_36 = arith.constant 5.000000e-01 : f32
    %122 = vector.broadcast %cst_36 : f32 to vector<1x256xf32>
    %123 = arith.cmpf ogt, %110, %122 : vector<1x256xf32>
    %124 = vector.extract_strided_slice %8 {offsets = [2, 0], sizes = [1, 256], strides = [1, 1]} : vector<4x256xi32> to vector<1x256xi32>
    %125 = vector.extract_strided_slice %8 {offsets = [0, 0], sizes = [1, 256], strides = [1, 1]} : vector<4x256xi32> to vector<1x256xi32>
    %126 = arith.select %123, %124, %125 : vector<1x256xi1>, vector<1x256xi32>
    %cst_37 = arith.constant dense<0.000000e+00> : vector<32x256xf32>
    %127 = tpu.matmul %3, %121, %cst_37 {dimension_numbers = #tpu.dot_dimension_numbers<[1], [0], [0], [1], [0, 0, 1, 1], [], []>} : vector<32x3xf32>, vector<3x256xf32>, vector<32x256xf32> -> vector<32x256xf32>
    %128 = vector.broadcast %4 : vector<32x1xf32> to vector<32x256xf32>
    %129 = arith.addf %127, %128 : vector<32x256xf32>
    %cst_38 = arith.constant 0.000000e+00 : f32
    %130 = vector.broadcast %cst_38 : f32 to vector<32x256xf32>
    %131 = arith.maximumf %129, %130 : vector<32x256xf32>
    %cst_39 = arith.constant dense<0.000000e+00> : vector<8x256xf32>
    %132 = tpu.matmul %5, %131, %cst_39 {dimension_numbers = #tpu.dot_dimension_numbers<[1], [0], [0], [1], [0, 0, 1, 1], [], []>} : vector<8x32xf32>, vector<32x256xf32>, vector<8x256xf32> -> vector<8x256xf32>
    %133 = vector.broadcast %6 : vector<8x1xf32> to vector<8x256xf32>
    %134 = arith.addf %132, %133 : vector<8x256xf32>
    %cst_40 = arith.constant dense<0xFF800000> : vector<256xf32>
    %135 = vector.multi_reduction <maximumf>, %134, %cst_40 [0] : vector<8x256xf32> to vector<256xf32>
    %136 = vector.shape_cast %135 : vector<256xf32> to vector<1x256xf32>
    %137 = vector.broadcast %136 : vector<1x256xf32> to vector<8x256xf32>
    %138 = arith.subf %134, %137 : vector<8x256xf32>
    %139 = math.exp %138 : vector<8x256xf32>
    %cst_41 = arith.constant dense<0.000000e+00> : vector<256xf32>
    %140 = vector.multi_reduction <add>, %139, %cst_41 [0] : vector<8x256xf32> to vector<256xf32>
    %141 = vector.shape_cast %140 : vector<256xf32> to vector<1x256xf32>
    %142 = math.log %141 : vector<1x256xf32>
    %143 = arith.addf %136, %142 : vector<1x256xf32>
    %144 = tpu.iota {dimensions = array<i32: 0>} : vector<8x256xi32>
    %145 = vector.broadcast %126 : vector<1x256xi32> to vector<8x256xi32>
    %146 = arith.cmpi eq, %144, %145 : vector<8x256xi32>
    %cst_42 = arith.constant 0.000000e+00 : f32
    %147 = vector.broadcast %cst_42 : f32 to vector<8x256xf32>
    %148 = arith.select %146, %134, %147 : vector<8x256xi1>, vector<8x256xf32>
    %cst_43 = arith.constant dense<0.000000e+00> : vector<256xf32>
    %149 = vector.multi_reduction <add>, %148, %cst_43 [0] : vector<8x256xf32> to vector<256xf32>
    %150 = vector.shape_cast %149 : vector<256xf32> to vector<1x256xf32>
    %c255_i32_44 = arith.constant 255 : i32
    %151 = vector.broadcast %c255_i32_44 : i32 to vector<1x256xi32>
    %152 = arith.cmpi ne, %126, %151 : vector<1x256xi32>
    %153 = arith.extui %152 : vector<1x256xi1> to vector<1x256xi32>
    %154 = arith.sitofp %153 : vector<1x256xi32> to vector<1x256xf32>
    %155 = arith.subf %143, %150 : vector<1x256xf32>
    %156 = arith.mulf %155, %154 : vector<1x256xf32>
    %157 = arith.addf %108, %156 : vector<1x256xf32>
    %158 = arith.addf %109, %154 : vector<1x256xf32>
    %159 = vector.extract_strided_slice %9 {offsets = [3, 0], sizes = [1, 256], strides = [1, 1]} : vector<4x256xf32> to vector<1x256xf32>
    %160 = vector.extract_strided_slice %7 {offsets = [3, 0, 0], sizes = [1, 3, 256], strides = [1, 1, 1]} : vector<4x3x256xf32> to vector<1x3x256xf32>
    %161 = vector.shape_cast %160 : vector<1x3x256xf32> to vector<3x256xf32>
    %162 = vector.broadcast %159 : vector<1x256xf32> to vector<3x256xf32>
    %163 = arith.mulf %161, %162 : vector<3x256xf32>
    %164 = vector.extract_strided_slice %7 {offsets = [1, 0, 0], sizes = [1, 3, 256], strides = [1, 1, 1]} : vector<4x3x256xf32> to vector<1x3x256xf32>
    %165 = vector.shape_cast %164 : vector<1x3x256xf32> to vector<3x256xf32>
    %cst_45 = arith.constant 1.000000e+00 : f32
    %166 = vector.broadcast %cst_45 : f32 to vector<1x256xf32>
    %167 = arith.subf %166, %159 : vector<1x256xf32>
    %168 = vector.broadcast %167 : vector<1x256xf32> to vector<3x256xf32>
    %169 = arith.mulf %165, %168 : vector<3x256xf32>
    %170 = arith.addf %163, %169 : vector<3x256xf32>
    %cst_46 = arith.constant 5.000000e-01 : f32
    %171 = vector.broadcast %cst_46 : f32 to vector<1x256xf32>
    %172 = arith.cmpf ogt, %159, %171 : vector<1x256xf32>
    %173 = vector.extract_strided_slice %8 {offsets = [3, 0], sizes = [1, 256], strides = [1, 1]} : vector<4x256xi32> to vector<1x256xi32>
    %174 = vector.extract_strided_slice %8 {offsets = [1, 0], sizes = [1, 256], strides = [1, 1]} : vector<4x256xi32> to vector<1x256xi32>
    %175 = arith.select %172, %173, %174 : vector<1x256xi1>, vector<1x256xi32>
    %cst_47 = arith.constant dense<0.000000e+00> : vector<32x256xf32>
    %176 = tpu.matmul %3, %170, %cst_47 {dimension_numbers = #tpu.dot_dimension_numbers<[1], [0], [0], [1], [0, 0, 1, 1], [], []>} : vector<32x3xf32>, vector<3x256xf32>, vector<32x256xf32> -> vector<32x256xf32>
    %177 = vector.broadcast %4 : vector<32x1xf32> to vector<32x256xf32>
    %178 = arith.addf %176, %177 : vector<32x256xf32>
    %cst_48 = arith.constant 0.000000e+00 : f32
    %179 = vector.broadcast %cst_48 : f32 to vector<32x256xf32>
    %180 = arith.maximumf %178, %179 : vector<32x256xf32>
    %cst_49 = arith.constant dense<0.000000e+00> : vector<8x256xf32>
    %181 = tpu.matmul %5, %180, %cst_49 {dimension_numbers = #tpu.dot_dimension_numbers<[1], [0], [0], [1], [0, 0, 1, 1], [], []>} : vector<8x32xf32>, vector<32x256xf32>, vector<8x256xf32> -> vector<8x256xf32>
    %182 = vector.broadcast %6 : vector<8x1xf32> to vector<8x256xf32>
    %183 = arith.addf %181, %182 : vector<8x256xf32>
    %cst_50 = arith.constant dense<0xFF800000> : vector<256xf32>
    %184 = vector.multi_reduction <maximumf>, %183, %cst_50 [0] : vector<8x256xf32> to vector<256xf32>
    %185 = vector.shape_cast %184 : vector<256xf32> to vector<1x256xf32>
    %186 = vector.broadcast %185 : vector<1x256xf32> to vector<8x256xf32>
    %187 = arith.subf %183, %186 : vector<8x256xf32>
    %188 = math.exp %187 : vector<8x256xf32>
    %cst_51 = arith.constant dense<0.000000e+00> : vector<256xf32>
    %189 = vector.multi_reduction <add>, %188, %cst_51 [0] : vector<8x256xf32> to vector<256xf32>
    %190 = vector.shape_cast %189 : vector<256xf32> to vector<1x256xf32>
    %191 = math.log %190 : vector<1x256xf32>
    %192 = arith.addf %185, %191 : vector<1x256xf32>
    %193 = tpu.iota {dimensions = array<i32: 0>} : vector<8x256xi32>
    %194 = vector.broadcast %175 : vector<1x256xi32> to vector<8x256xi32>
    %195 = arith.cmpi eq, %193, %194 : vector<8x256xi32>
    %cst_52 = arith.constant 0.000000e+00 : f32
    %196 = vector.broadcast %cst_52 : f32 to vector<8x256xf32>
    %197 = arith.select %195, %183, %196 : vector<8x256xi1>, vector<8x256xf32>
    %cst_53 = arith.constant dense<0.000000e+00> : vector<256xf32>
    %198 = vector.multi_reduction <add>, %197, %cst_53 [0] : vector<8x256xf32> to vector<256xf32>
    %199 = vector.shape_cast %198 : vector<256xf32> to vector<1x256xf32>
    %c255_i32_54 = arith.constant 255 : i32
    %200 = vector.broadcast %c255_i32_54 : i32 to vector<1x256xi32>
    %201 = arith.cmpi ne, %175, %200 : vector<1x256xi32>
    %202 = arith.extui %201 : vector<1x256xi1> to vector<1x256xi32>
    %203 = arith.sitofp %202 : vector<1x256xi32> to vector<1x256xf32>
    %204 = arith.subf %192, %199 : vector<1x256xf32>
    %205 = arith.mulf %204, %203 : vector<1x256xf32>
    %206 = arith.addf %157, %205 : vector<1x256xf32>
    %207 = arith.addf %158, %203 : vector<1x256xf32>
    %c0_55 = arith.constant 0 : index
    %c0_56 = arith.constant 0 : index
    %c0_57 = arith.constant 0 : index
    %208 = vector.load %arg9[%c0_55, %c0_56, %c0_57] : memref<1x1x256xf32, #tpu.memory_space<vmem>>, vector<1x1x256xf32>
    %209 = vector.shape_cast %206 : vector<1x256xf32> to vector<1x1x256xf32>
    %210 = arith.addf %208, %209 : vector<1x1x256xf32>
    %c0_58 = arith.constant 0 : index
    %c0_59 = arith.constant 0 : index
    %c0_60 = arith.constant 0 : index
    %211 = vector.load %arg9[%c0_58, %c0_59, %c0_60] : memref<1x1x256xf32, #tpu.memory_space<vmem>>, vector<1x1x256xf32>
    tpu.vector_store %arg9[%c0_58, %c0_59, %c0_60], %210 {strides = array<i32>} : memref<1x1x256xf32, #tpu.memory_space<vmem>>, vector<1x1x256xf32>,
    %c0_61 = arith.constant 0 : index
    %c0_62 = arith.constant 0 : index
    %c0_63 = arith.constant 0 : index
    %212 = vector.load %arg10[%c0_61, %c0_62, %c0_63] : memref<1x1x256xf32, #tpu.memory_space<vmem>>, vector<1x1x256xf32>
    %213 = vector.shape_cast %207 : vector<1x256xf32> to vector<1x1x256xf32>
    %214 = arith.addf %212, %213 : vector<1x1x256xf32>
    %c0_64 = arith.constant 0 : index
    %c0_65 = arith.constant 0 : index
    %c0_66 = arith.constant 0 : index
    %215 = vector.load %arg10[%c0_64, %c0_65, %c0_66] : memref<1x1x256xf32, #tpu.memory_space<vmem>>, vector<1x1x256xf32>
    tpu.vector_store %arg10[%c0_64, %c0_65, %c0_66], %214 {strides = array<i32>} : memref<1x1x256xf32, #tpu.memory_space<vmem>>, vector<1x1x256xf32>,
    return
  }
  func.func @transform_0(%arg0: i32, %arg1: i32) -> (i32, i32, i32) {
    %c1_i32 = arith.constant 1 : i32
    %0 = arith.muli %arg0, %c1_i32 : i32
    %1 = arith.addi %0, %arg1 : i32
    %c0_i32 = arith.constant 0 : i32
    %c0_i32_0 = arith.constant 0 : i32
    %c0_i32_1 = arith.constant 0 : i32
    return %c0_i32, %c0_i32_0, %1 : i32, i32, i32
  }
  func.func @transform_1(%arg0: i32, %arg1: i32) -> (i32, i32) {
    %c1_i32 = arith.constant 1 : i32
    %0 = arith.muli %arg0, %c1_i32 : i32
    %1 = arith.addi %0, %arg1 : i32
    %c0_i32 = arith.constant 0 : i32
    %c0_i32_0 = arith.constant 0 : i32
    return %c0_i32, %1 : i32, i32
  }
  func.func @transform_2(%arg0: i32, %arg1: i32) -> (i32, i32) {
    %c1_i32 = arith.constant 1 : i32
    %0 = arith.muli %arg0, %c1_i32 : i32
    %1 = arith.addi %0, %arg1 : i32
    %c0_i32 = arith.constant 0 : i32
    %c0_i32_0 = arith.constant 0 : i32
    return %c0_i32, %1 : i32, i32
  }
  func.func @transform_3(%arg0: i32, %arg1: i32) -> (i32, i32) {
    %c0_i32 = arith.constant 0 : i32
    %c0_i32_0 = arith.constant 0 : i32
    %c0_i32_1 = arith.constant 0 : i32
    return %c0_i32, %c0_i32_0 : i32, i32
  }
  func.func @transform_4(%arg0: i32, %arg1: i32) -> (i32, i32) {
    %c0_i32 = arith.constant 0 : i32
    %c0_i32_0 = arith.constant 0 : i32
    %c0_i32_1 = arith.constant 0 : i32
    return %c0_i32, %c0_i32_0 : i32, i32
  }
  func.func @transform_5(%arg0: i32, %arg1: i32) -> (i32, i32) {
    %c0_i32 = arith.constant 0 : i32
    %c0_i32_0 = arith.constant 0 : i32
    %c0_i32_1 = arith.constant 0 : i32
    return %c0_i32, %c0_i32_0 : i32, i32
  }
  func.func @transform_6(%arg0: i32, %arg1: i32) -> (i32, i32) {
    %c0_i32 = arith.constant 0 : i32
    %c0_i32_0 = arith.constant 0 : i32
    %c0_i32_1 = arith.constant 0 : i32
    return %c0_i32, %c0_i32_0 : i32, i32
  }
  func.func @transform_7(%arg0: i32, %arg1: i32) -> (i32, i32, i32) {
    %c0_i32 = arith.constant 0 : i32
    %c0_i32_0 = arith.constant 0 : i32
    %c0_i32_1 = arith.constant 0 : i32
    return %arg0, %c0_i32, %c0_i32_0 : i32, i32, i32
  }
  func.func @transform_8(%arg0: i32, %arg1: i32) -> (i32, i32, i32) {
    %c0_i32 = arith.constant 0 : i32
    %c0_i32_0 = arith.constant 0 : i32
    %c0_i32_1 = arith.constant 0 : i32
    return %arg0, %c0_i32, %c0_i32_0 : i32, i32, i32
  }
}

</mosaic_0001>

<llo_original>
// kernel: forward_train.4
$region0: #{forward_train.4}
  #allocation0 [shape = 'u32[]', space=smem, size = 0x4, offset = 0x4, fixed_abs, tag = 'smem constant byte address 0x4 - core index']
  #allocation1 [shape = 'u32[144,128]{1,0:T(1,128)}', space=vmem, size = 0x12000, scoped, tag = 'internal scratch']
  %s0 = inlined_call_operand.vmem [shape: f32[2,3,256], index: 0, kind: input, shape index: {}]
  %s1 = inlined_call_operand.vmem [shape: f32[32,3], index: 1, kind: input, shape index: {}]
  %s2 = inlined_call_operand.vmem [shape: f32[32,1], index: 2, kind: input, shape index: {}]
  %s3 = inlined_call_operand.vmem [shape: f32[8,32], index: 3, kind: input, shape index: {}]
  %s4 = inlined_call_operand.vmem [shape: f32[8,1], index: 4, kind: input, shape index: {}]
  %s5 = inlined_call_operand.vmem [shape: s32[2,256], index: 5, kind: output, shape index: {}]
  %s6 = sld [smem:[#allocation0]]
  $region30: #{forward_train.4} parent=0
    _
  %s8 = ssub.s32 1, %s6
  %s9 = scalar_select 0, %s8, %s6
  // Predicated region
  $region2: #{forward_train.4} parent=0 // pred_check
    _
  $region3: #{forward_train.4} parent=0 // pred_check_branch
    %11 = sbr.rel (0) target = $region5
  $region4: #{forward_train.4} parent=0 // pred_region
    _
  $region5: #{forward_train.4} parent=0 // pred_fallthru
    _
  // Predicated region
  $region6: #{forward_train.4} parent=0 // pred_check
    _
  $region7: #{forward_train.4} parent=0 // pred_check_branch
    %13 = sbr.rel (0) target = $region9
  $region8: #{forward_train.4} parent=0 // pred_region
    _
  $region9: #{forward_train.4} parent=0 // pred_fallthru
    _
  // Predicated region
  $region10: #{forward_train.4} parent=0 // pred_check
    _
  $region11: #{forward_train.4} parent=0 // pred_check_branch
    %15 = sbr.rel (0) target = $region13
  $region12: #{forward_train.4} parent=0 // pred_region
    _
  $region13: #{forward_train.4} parent=0 // pred_fallthru
    _
  // Predicated region
  $region14: #{forward_train.4} parent=0 // pred_check
    _
  $region15: #{forward_train.4} parent=0 // pred_check_branch
    %17 = sbr.rel (0) target = $region17
  $region16: #{forward_train.4} parent=0 // pred_region
    _
  $region17: #{forward_train.4} parent=0 // pred_fallthru
    _
  // Predicated region
  $region18: #{forward_train.4} parent=0 // pred_check
    _
  $region19: #{forward_train.4} parent=0 // pred_check_branch
    %19 = sbr.rel (0) target = $region21
  $region20: #{forward_train.4} parent=0 // pred_region
    _
  $region21: #{forward_train.4} parent=0 // pred_fallthru
    _
  %v20 = vld [vmem:[%s1] sm:$0xff]
  %v21 = vld [vmem:[%s1 + $0x8] sm:$0xff]
  %v22 = vld [vmem:[%s1 + $0x10] sm:$0xff]
  %v23 = vld [vmem:[%s1 + $0x18] sm:$0xff]
  %v24 = vld [vmem:[%s2] sm:$0xff]
  %v25 = vld [vmem:[%s2 + $0x8] sm:$0xff]
  %v26 = vld [vmem:[%s2 + $0x10] sm:$0xff]
  %v27 = vld [vmem:[%s2 + $0x18] sm:$0xff]
  %v28 = vld [vmem:[%s3] sm:$0xff]
  %v29 = vld [vmem:[%s4] sm:$0xff]
  %v30 = vld [vmem:[%s0] sm:$0x77]
  %v31 = vld [vmem:[%s0 + $0x8] sm:$0x77]
  %33 = vset.pattern.permute.xlu0 0
  %34 = vperm.xlu0 %33, %v24
  %v35 = vpop.permute.xlu0 %34
  %38 = vset.pattern.permute.xlu0 0
  %39 = vperm.xlu0 %38, %v25
  %v40 = vpop.permute.xlu0 %39
  %43 = vset.pattern.permute.xlu0 0
  %44 = vperm.xlu0 %43, %v26
  %v45 = vpop.permute.xlu0 %44
  %48 = vset.pattern.permute.xlu0 0
  %49 = vperm.xlu0 %48, %v27
  %v50 = vpop.permute.xlu0 %49
  %v53 = vcombine.high %v30, %v30
  %vm54 = vcmask 23552
  %v56 = vsel %vm54, %v20, 0
  %v59 = vsel %vm54, %v21, 0
  %v62 = vsel %vm54, %v22, 0
  %v65 = vsel %vm54, %v23, 0
  %vm67 = vcmask 1042432
  %v68 = vsel %vm67, %v30, 0
  %v70 = vsel %vm67, %v53, 0
  %72 = vmatprep.subr.mxu0 %v70
  %73 = vmatpush1.msra.mxu0 %v68
  %74 = vmatprep.subr.mxu0 0.0
  %75 = vmatpush1.msra.mxu0 0.0
  %76 = vmatprep.subr.mxu0 0.0
  %77 = vmatpush1.msra.mxu0 0.0
  %78 = vmatprep.subr.mxu0 0.0
  %79 = vmatpush1.msra.mxu0 0.0
  %80 = vmatprep.subr.mxu0 0.0
  %81 = vmatpush1.msra.mxu0 0.0
  %82 = vmatprep.subr.mxu0 0.0
  %83 = vmatpush1.msra.mxu0 0.0
  %84 = vmatprep.subr.mxu0 0.0
  %85 = vmatpush1.msra.mxu0 0.0
  %86 = vmatprep.subr.mxu0 0.0
  %87 = vmatpush1.msra.mxu0 0.0
  %88 = vmatprep.subr.mxu0 0.0
  %89 = vmatpush1.msra.mxu0 0.0
  %90 = vmatprep.subr.mxu0 0.0
  %91 = vmatpush1.msra.mxu0 0.0
  %92 = vmatprep.subr.mxu0 0.0
  %93 = vmatpush1.msra.mxu0 0.0
  %94 = vmatprep.subr.mxu0 0.0
  %95 = vmatpush1.msra.mxu0 0.0
  %96 = vmatprep.subr.mxu0 0.0
  %97 = vmatpush1.msra.mxu0 0.0
  %98 = vmatprep.subr.mxu0 0.0
  %99 = vmatpush1.msra.mxu0 0.0
  %100 = vmatprep.subr.mxu0 0.0
  %101 = vmatpush1.msra.mxu0 0.0
  %102 = vmatprep.subr.mxu0 0.0
  %103 = vmatpush1.msra.mxu0 0.0
  %104 = vmatprep.subr.mxu0 0.0
  %105 = vmatpush1.msra.mxu0 0.0
  %106 = vmatprep.subr.mxu0 0.0
  %107 = vmatpush1.msra.mxu0 0.0
  %108 = vmatprep.subr.mxu0 0.0
  %109 = vmatpush1.msra.mxu0 0.0
  %110 = vmatprep.subr.mxu0 0.0
  %111 = vmatpush1.msra.mxu0 0.0
  %112 = vmatprep.subr.mxu0 0.0
  %113 = vmatpush1.msra.mxu0 0.0
  %114 = vmatprep.subr.mxu0 0.0
  %115 = vmatpush1.msra.mxu0 0.0
  %116 = vmatprep.subr.mxu0 0.0
  %117 = vmatpush1.msra.mxu0 0.0
  %118 = vmatprep.subr.mxu0 0.0
  %119 = vmatpush1.msra.mxu0 0.0
  %120 = vmatprep.subr.mxu0 0.0
  %121 = vmatpush1.msra.mxu0 0.0
  %122 = vmatprep.subr.mxu0 0.0
  %123 = vmatpush1.msra.mxu0 0.0
  %124 = vmatprep.subr.mxu0 0.0
  %125 = vmatpush1.msra.mxu0 0.0
  %126 = vmatprep.subr.mxu0 0.0
  %127 = vmatpush1.msra.mxu0 0.0
  %128 = vmatprep.subr.mxu0 0.0
  %129 = vmatpush1.msra.mxu0 0.0
  %130 = vmatprep.subr.mxu0 0.0
  %131 = vmatpush1.msra.mxu0 0.0
  %132 = vmatprep.subr.mxu0 0.0
  %133 = vmatpush1.msra.mxu0 0.0
  %134 = vmatprep.subr.mxu0 0.0
  %135 = vmatpush1.msra.mxu0 0.0
  %136 = vmatprep.mubr.f32.mxu0 0.0
  %137 = vmatmul.mubr.f32.gmra.mrb[0].mxu0 %v56
  %v138 = vpop.f32.mrb[0].mxu0
  %v139 = vadd.f32 %v35, %v138
  %v140 = vpop.f32.mrb[0].mxu0
  %v141 = vadd.f32 %v35, %v140
  %142 = vmatprep.mubr.f32.mxu0 0.0
  %143 = vmatmul.mubr.f32.gmra.mrb[0].mxu0 %v59
  %v144 = vpop.f32.mrb[0].mxu0
  %v145 = vadd.f32 %v40, %v144
  %v146 = vpop.f32.mrb[0].mxu0
  %v147 = vadd.f32 %v40, %v146
  %148 = vmatprep.mubr.f32.mxu0 0.0
  %149 = vmatmul.mubr.f32.gmra.mrb[0].mxu0 %v62
  %v150 = vpop.f32.mrb[0].mxu0
  %v151 = vadd.f32 %v45, %v150
  %v152 = vpop.f32.mrb[0].mxu0
  %v153 = vadd.f32 %v45, %v152
  %154 = vmatprep.mubr.f32.mxu0 0.0
  %155 = vmatmul.mubr.f32.gmra.mrb[0].mxu0 %v65
  %v156 = vpop.f32.mrb[0].mxu0
  %v157 = vadd.f32 %v50, %v156
  %v158 = vpop.f32.mrb[0].mxu0
  %v159 = vadd.f32 %v50, %v158
  %160 = vdwg.mxu0
  %v161 = vmax.f32 %v139, 0.0
  %v162 = vmax.f32 %v141, 0.0
  %v163 = vmax.f32 %v145, 0.0
  %v164 = vmax.f32 %v147, 0.0
  %v165 = vmax.f32 %v151, 0.0
  %v166 = vmax.f32 %v153, 0.0
  %v167 = vmax.f32 %v157, 0.0
  %v168 = vmax.f32 %v159, 0.0
  %170 = vset.pattern.permute.xlu0 0
  %171 = vperm.xlu0 %170, %v29
  %v172 = vpop.permute.xlu0 %171
  %vm174 = vcmask 261120
  %v176 = vsel %vm174, %v28, 0
  %178 = vmatprep.subr.mxu0 %v162
  %179 = vmatpush1.msra.mxu0 %v161
  %180 = vmatprep.subr.mxu0 %v164
  %181 = vmatpush1.msra.mxu0 %v163
  %182 = vmatprep.subr.mxu0 %v166
  %183 = vmatpush1.msra.mxu0 %v165
  %184 = vmatprep.subr.mxu0 %v168
  %185 = vmatpush1.msra.mxu0 %v167
  %186 = vmatprep.subr.mxu0 0.0
  %187 = vmatpush1.msra.mxu0 0.0
  %188 = vmatprep.subr.mxu0 0.0
  %189 = vmatpush1.msra.mxu0 0.0
  %190 = vmatprep.subr.mxu0 0.0
  %191 = vmatpush1.msra.mxu0 0.0
  %192 = vmatprep.subr.mxu0 0.0
  %193 = vmatpush1.msra.mxu0 0.0
  %194 = vmatprep.subr.mxu0 0.0
  %195 = vmatpush1.msra.mxu0 0.0
  %196 = vmatprep.subr.mxu0 0.0
  %197 = vmatpush1.msra.mxu0 0.0
  %198 = vmatprep.subr.mxu0 0.0
  %199 = vmatpush1.msra.mxu0 0.0
  %200 = vmatprep.subr.mxu0 0.0
  %201 = vmatpush1.msra.mxu0 0.0
  %202 = vmatprep.subr.mxu0 0.0
  %203 = vmatpush1.msra.mxu0 0.0
  %204 = vmatprep.subr.mxu0 0.0
  %205 = vmatpush1.msra.mxu0 0.0
  %206 = vmatprep.subr.mxu0 0.0
  %207 = vmatpush1.msra.mxu0 0.0
  %208 = vmatprep.subr.mxu0 0.0
  %209 = vmatpush1.msra.mxu0 0.0
  %210 = vmatprep.subr.mxu0 0.0
  %211 = vmatpush1.msra.mxu0 0.0
  %212 = vmatprep.subr.mxu0 0.0
  %213 = vmatpush1.msra.mxu0 0.0
  %214 = vmatprep.subr.mxu0 0.0
  %215 = vmatpush1.msra.mxu0 0.0
  %216 = vmatprep.subr.mxu0 0.0
  %217 = vmatpush1.msra.mxu0 0.0
  %218 = vmatprep.subr.mxu0 0.0
  %219 = vmatpush1.msra.mxu0 0.0
  %220 = vmatprep.subr.mxu0 0.0
  %221 = vmatpush1.msra.mxu0 0.0
  %222 = vmatprep.subr.mxu0 0.0
  %223 = vmatpush1.msra.mxu0 0.0
  %224 = vmatprep.subr.mxu0 0.0
  %225 = vmatpush1.msra.mxu0 0.0
  %226 = vmatprep.subr.mxu0 0.0
  %227 = vmatpush1.msra.mxu0 0.0
  %228 = vmatprep.subr.mxu0 0.0
  %229 = vmatpush1.msra.mxu0 0.0
  %230 = vmatprep.subr.mxu0 0.0
  %231 = vmatpush1.msra.mxu0 0.0
  %232 = vmatprep.subr.mxu0 0.0
  %233 = vmatpush1.msra.mxu0 0.0
  %234 = vmatprep.subr.mxu0 0.0
  %235 = vmatpush1.msra.mxu0 0.0
  %236 = vmatprep.subr.mxu0 0.0
  %237 = vmatpush1.msra.mxu0 0.0
  %238 = vmatprep.subr.mxu0 0.0
  %239 = vmatpush1.msra.mxu0 0.0
  %240 = vmatprep.subr.mxu0 0.0
  %241 = vmatpush1.msra.mxu0 0.0
  %242 = vmatprep.mubr.f32.mxu0 0.0
  %243 = vmatmul.mubr.f32.gmra.mrb[0].mxu0 %v176
  %v244 = vpop.f32.mrb[0].mxu0
  %v245 = vadd.f32 %v172, %v244
  %v246 = vpop.f32.mrb[0].mxu0
  %v247 = vadd.f32 %v172, %v246
  %248 = vdwg.mxu0
  %v249 = vrot.slane %v245, 4
  %v250 = vmax.f32 %v245, %v249
  %v251 = vrot.slane %v250, 2
  %v252 = vmax.f32 %v250, %v251
  %v253 = vrot.slane %v252, 1
  %v254 = vmax.f32 %v252, %v253
  %v255 = vrot.slane %v247, 4
  %v256 = vmax.f32 %v247, %v255
  %v257 = vrot.slane %v256, 2
  %v258 = vmax.f32 %v256, %v257
  %v259 = vrot.slane %v258, 1
  %v260 = vmax.f32 %v258, %v259
  %v261 = vlaneseq
  %v262 = vshrl.u32 %v261, 7
  %vm263 = vcmp.eq.f32.partialorder %v245, %v254
  %vm264 = vcmp.eq.f32.partialorder %v247, %v260
  %v265 = vsel %vm263, %v262, 8
  %v266 = vsel %vm264, %v262, 8
  %v267 = vrot.slane %v265, 4
  %vm268 = vcmp.lt.s32.totalorder %v265, %v267
  %v269 = vsel %vm268, %v265, %v267
  %v270 = vrot.slane %v269, 2
  %vm271 = vcmp.lt.s32.totalorder %v269, %v270
  %v272 = vsel %vm271, %v269, %v270
  %v273 = vrot.slane %v272, 1
  %vm274 = vcmp.lt.s32.totalorder %v272, %v273
  %v275 = vsel %vm274, %v272, %v273
  %v276 = vrot.slane %v266, 4
  %vm277 = vcmp.lt.s32.totalorder %v266, %v276
  %v278 = vsel %vm277, %v266, %v276
  %v279 = vrot.slane %v278, 2
  %vm280 = vcmp.lt.s32.totalorder %v278, %v279
  %v281 = vsel %vm280, %v278, %v279
  %v282 = vrot.slane %v281, 1
  %vm283 = vcmp.lt.s32.totalorder %v281, %v282
  %v284 = vsel %vm283, %v281, %v282
  %v286 = vcombine.high %v31, %v31
  %v287 = vsel %vm67, %v31, 0
  %v289 = vsel %vm67, %v286, 0
  %291 = vmatprep.subr.mxu0 %v289
  %292 = vmatpush1.msra.mxu0 %v287
  %293 = vmatprep.subr.mxu0 0.0
  %294 = vmatpush1.msra.mxu0 0.0
  %295 = vmatprep.subr.mxu0 0.0
  %296 = vmatpush1.msra.mxu0 0.0
  %297 = vmatprep.subr.mxu0 0.0
  %298 = vmatpush1.msra.mxu0 0.0
  %299 = vmatprep.subr.mxu0 0.0
  %300 = vmatpush1.msra.mxu0 0.0
  %301 = vmatprep.subr.mxu0 0.0
  %302 = vmatpush1.msra.mxu0 0.0
  %303 = vmatprep.subr.mxu0 0.0
  %304 = vmatpush1.msra.mxu0 0.0
  %305 = vmatprep.subr.mxu0 0.0
  %306 = vmatpush1.msra.mxu0 0.0
  %307 = vmatprep.subr.mxu0 0.0
  %308 = vmatpush1.msra.mxu0 0.0
  %309 = vmatprep.subr.mxu0 0.0
  %310 = vmatpush1.msra.mxu0 0.0
  %311 = vmatprep.subr.mxu0 0.0
  %312 = vmatpush1.msra.mxu0 0.0
  %313 = vmatprep.subr.mxu0 0.0
  %314 = vmatpush1.msra.mxu0 0.0
  %315 = vmatprep.subr.mxu0 0.0
  %316 = vmatpush1.msra.mxu0 0.0
  %317 = vmatprep.subr.mxu0 0.0
  %318 = vmatpush1.msra.mxu0 0.0
  %319 = vmatprep.subr.mxu0 0.0
  %320 = vmatpush1.msra.mxu0 0.0
  %321 = vmatprep.subr.mxu0 0.0
  %322 = vmatpush1.msra.mxu0 0.0
  %323 = vmatprep.subr.mxu0 0.0
  %324 = vmatpush1.msra.mxu0 0.0
  %325 = vmatprep.subr.mxu0 0.0
  %326 = vmatpush1.msra.mxu0 0.0
  %327 = vmatprep.subr.mxu0 0.0
  %328 = vmatpush1.msra.mxu0 0.0
  %329 = vmatprep.subr.mxu0 0.0
  %330 = vmatpush1.msra.mxu0 0.0
  %331 = vmatprep.subr.mxu0 0.0
  %332 = vmatpush1.msra.mxu0 0.0
  %333 = vmatprep.subr.mxu0 0.0
  %334 = vmatpush1.msra.mxu0 0.0
  %335 = vmatprep.subr.mxu0 0.0
  %336 = vmatpush1.msra.mxu0 0.0
  %337 = vmatprep.subr.mxu0 0.0
  %338 = vmatpush1.msra.mxu0 0.0
  %339 = vmatprep.subr.mxu0 0.0
  %340 = vmatpush1.msra.mxu0 0.0
  %341 = vmatprep.subr.mxu0 0.0
  %342 = vmatpush1.msra.mxu0 0.0
  %343 = vmatprep.subr.mxu0 0.0
  %344 = vmatpush1.msra.mxu0 0.0
  %345 = vmatprep.subr.mxu0 0.0
  %346 = vmatpush1.msra.mxu0 0.0
  %347 = vmatprep.subr.mxu0 0.0
  %348 = vmatpush1.msra.mxu0 0.0
  %349 = vmatprep.subr.mxu0 0.0
  %350 = vmatpush1.msra.mxu0 0.0
  %351 = vmatprep.subr.mxu0 0.0
  %352 = vmatpush1.msra.mxu0 0.0
  %353 = vmatprep.subr.mxu0 0.0
  %354 = vmatpush1.msra.mxu0 0.0
  %355 = vmatprep.mubr.f32.mxu0 0.0
  %356 = vmatmul.mubr.f32.gmra.mrb[0].mxu0 %v56
  %v357 = vpop.f32.mrb[0].mxu0
  %v358 = vadd.f32 %v35, %v357
  %v359 = vpop.f32.mrb[0].mxu0
  %v360 = vadd.f32 %v35, %v359
  %361 = vmatprep.mubr.f32.mxu0 0.0
  %362 = vmatmul.mubr.f32.gmra.mrb[0].mxu0 %v59
  %v363 = vpop.f32.mrb[0].mxu0
  %v364 = vadd.f32 %v40, %v363
  %v365 = vpop.f32.mrb[0].mxu0
  %v366 = vadd.f32 %v40, %v365
  %367 = vmatprep.mubr.f32.mxu0 0.0
  %368 = vmatmul.mubr.f32.gmra.mrb[0].mxu0 %v62
  %v369 = vpop.f32.mrb[0].mxu0
  %v370 = vadd.f32 %v45, %v369
  %v371 = vpop.f32.mrb[0].mxu0
  %v372 = vadd.f32 %v45, %v371
  %373 = vmatprep.mubr.f32.mxu0 0.0
  %374 = vmatmul.mubr.f32.gmra.mrb[0].mxu0 %v65
  %v375 = vpop.f32.mrb[0].mxu0
  %v376 = vadd.f32 %v50, %v375
  %v377 = vpop.f32.mrb[0].mxu0
  %v378 = vadd.f32 %v50, %v377
  %379 = vdwg.mxu0
  %v380 = vmax.f32 %v358, 0.0
  %v381 = vmax.f32 %v360, 0.0
  %v382 = vmax.f32 %v364, 0.0
  %v383 = vmax.f32 %v366, 0.0
  %v384 = vmax.f32 %v370, 0.0
  %v385 = vmax.f32 %v372, 0.0
  %v386 = vmax.f32 %v376, 0.0
  %v387 = vmax.f32 %v378, 0.0
  %388 = vmatprep.subr.mxu0 %v381
  %389 = vmatpush1.msra.mxu0 %v380
  %390 = vmatprep.subr.mxu0 %v383
  %391 = vmatpush1.msra.mxu0 %v382
  %392 = vmatprep.subr.mxu0 %v385
  %393 = vmatpush1.msra.mxu0 %v384
  %394 = vmatprep.subr.mxu0 %v387
  %395 = vmatpush1.msra.mxu0 %v386
  %396 = vmatprep.subr.mxu0 0.0
  %397 = vmatpush1.msra.mxu0 0.0
  %398 = vmatprep.subr.mxu0 0.0
  %399 = vmatpush1.msra.mxu0 0.0
  %400 = vmatprep.subr.mxu0 0.0
  %401 = vmatpush1.msra.mxu0 0.0
  %402 = vmatprep.subr.mxu0 0.0
  %403 = vmatpush1.msra.mxu0 0.0
  %404 = vmatprep.subr.mxu0 0.0
  %405 = vmatpush1.msra.mxu0 0.0
  %406 = vmatprep.subr.mxu0 0.0
  %407 = vmatpush1.msra.mxu0 0.0
  %408 = vmatprep.subr.mxu0 0.0
  %409 = vmatpush1.msra.mxu0 0.0
  %410 = vmatprep.subr.mxu0 0.0
  %411 = vmatpush1.msra.mxu0 0.0
  %412 = vmatprep.subr.mxu0 0.0
  %413 = vmatpush1.msra.mxu0 0.0
  %414 = vmatprep.subr.mxu0 0.0
  %415 = vmatpush1.msra.mxu0 0.0
  %416 = vmatprep.subr.mxu0 0.0
  %417 = vmatpush1.msra.mxu0 0.0
  %418 = vmatprep.subr.mxu0 0.0
  %419 = vmatpush1.msra.mxu0 0.0
  %420 = vmatprep.subr.mxu0 0.0
  %421 = vmatpush1.msra.mxu0 0.0
  %422 = vmatprep.subr.mxu0 0.0
  %423 = vmatpush1.msra.mxu0 0.0
  %424 = vmatprep.subr.mxu0 0.0
  %425 = vmatpush1.msra.mxu0 0.0
  %426 = vmatprep.subr.mxu0 0.0
  %427 = vmatpush1.msra.mxu0 0.0
  %428 = vmatprep.subr.mxu0 0.0
  %429 = vmatpush1.msra.mxu0 0.0
  %430 = vmatprep.subr.mxu0 0.0
  %431 = vmatpush1.msra.mxu0 0.0
  %432 = vmatprep.subr.mxu0 0.0
  %433 = vmatpush1.msra.mxu0 0.0
  %434 = vmatprep.subr.mxu0 0.0
  %435 = vmatpush1.msra.mxu0 0.0
  %436 = vmatprep.subr.mxu0 0.0
  %437 = vmatpush1.msra.mxu0 0.0
  %438 = vmatprep.subr.mxu0 0.0
  %439 = vmatpush1.msra.mxu0 0.0
  %440 = vmatprep.subr.mxu0 0.0
  %441 = vmatpush1.msra.mxu0 0.0
  %442 = vmatprep.subr.mxu0 0.0
  %443 = vmatpush1.msra.mxu0 0.0
  %444 = vmatprep.subr.mxu0 0.0
  %445 = vmatpush1.msra.mxu0 0.0
  %446 = vmatprep.subr.mxu0 0.0
  %447 = vmatpush1.msra.mxu0 0.0
  %448 = vmatprep.subr.mxu0 0.0
  %449 = vmatpush1.msra.mxu0 0.0
  %450 = vmatprep.subr.mxu0 0.0
  %451 = vmatpush1.msra.mxu0 0.0
  %452 = vmatprep.mubr.f32.mxu0 0.0
  %453 = vmatmul.mubr.f32.gmra.mrb[0].mxu0 %v176
  %v454 = vpop.f32.mrb[0].mxu0
  %v455 = vadd.f32 %v172, %v454
  %v456 = vpop.f32.mrb[0].mxu0
  %v457 = vadd.f32 %v172, %v456
  %458 = vdwg.mxu0
  %v459 = vrot.slane %v455, 4
  %v460 = vmax.f32 %v455, %v459
  %v461 = vrot.slane %v460, 2
  %v462 = vmax.f32 %v460, %v461
  %v463 = vrot.slane %v462, 1
  %v464 = vmax.f32 %v462, %v463
  %v465 = vrot.slane %v457, 4
  %v466 = vmax.f32 %v457, %v465
  %v467 = vrot.slane %v466, 2
  %v468 = vmax.f32 %v466, %v467
  %v469 = vrot.slane %v468, 1
  %v470 = vmax.f32 %v468, %v469
  %vm471 = vcmp.eq.f32.partialorder %v455, %v464
  %vm472 = vcmp.eq.f32.partialorder %v457, %v470
  %v473 = vsel %vm471, %v262, 8
  %v474 = vsel %vm472, %v262, 8
  %v475 = vrot.slane %v473, 4
  %vm476 = vcmp.lt.s32.totalorder %v473, %v475
  %v477 = vsel %vm476, %v473, %v475
  %v478 = vrot.slane %v477, 2
  %vm479 = vcmp.lt.s32.totalorder %v477, %v478
  %v480 = vsel %vm479, %v477, %v478
  %v481 = vrot.slane %v480, 1
  %vm482 = vcmp.lt.s32.totalorder %v480, %v481
  %v483 = vsel %vm482, %v480, %v481
  %v484 = vrot.slane %v474, 4
  %vm485 = vcmp.lt.s32.totalorder %v474, %v484
  %v486 = vsel %vm485, %v474, %v484
  %v487 = vrot.slane %v486, 2
  %vm488 = vcmp.lt.s32.totalorder %v486, %v487
  %v489 = vsel %vm488, %v486, %v487
  %v490 = vrot.slane %v489, 1
  %vm491 = vcmp.lt.s32.totalorder %v489, %v490
  %v492 = vsel %vm491, %v489, %v490
  %vm493 = vcmask 1040384
  %v494 = vsel %vm493, %v275, %v483
  %v495 = vsel %vm493, %v284, %v492
  %v496 = vcombine.low %v494, %v495
  %v498 = vunpack.c.l.s4 1983009808
  %v499 = vunpack.c.0.s8 %v498
  %v500 = vlaneseq
  %v501 = vshrl.u32 %v500, 7
  %v502 = vsub.s32 %v499, %v501
  %v503 = vrot.slane %v496, %v502
  %504 = vst [vmem:[%s5] sm:$0xf] %v503
  // Predicated region
  $region22: #{forward_train.4} parent=0 // pred_check
    _
  $region23: #{forward_train.4} parent=0 // pred_check_branch
    %506 = sbr.rel (0) target = $region25
  $region24: #{forward_train.4} parent=0 // pred_region
    _
  $region25: #{forward_train.4} parent=0 // pred_fallthru
    _
  // Predicated region
  $region26: #{forward_train.4} parent=0 // pred_check
    _
  $region27: #{forward_train.4} parent=0 // pred_check_branch
    %508 = sbr.rel (0) target = $region29
  $region28: #{forward_train.4} parent=0 // pred_region
    _
  $region29: #{forward_train.4} parent=0 // pred_fallthru
    _

// kernel: forward_train.6
$region0: #{forward_train.6}
  #allocation0 [shape = 'u32[]', space=smem, size = 0x4, offset = 0x4, fixed_abs, tag = 'smem constant byte address 0x4 - core index']
  #allocation1 [shape = 'u32[144,128]{1,0:T(1,128)}', space=vmem, size = 0x12000, scoped, tag = 'internal scratch']
  %s0 = inlined_call_operand.vmem [shape: f32[4,3,256], index: 0, kind: input, shape index: {}]
  %s1 = inlined_call_operand.vmem [shape: s32[4,256], index: 1, kind: input, shape index: {}]
  %s2 = inlined_call_operand.vmem [shape: f32[4,256], index: 2, kind: input, shape index: {}]
  %s3 = inlined_call_operand.vmem [shape: f32[32,3], index: 3, kind: input, shape index: {}]
  %s4 = inlined_call_operand.vmem [shape: f32[32,1], index: 4, kind: input, shape index: {}]
  %s5 = inlined_call_operand.vmem [shape: f32[8,32], index: 5, kind: input, shape index: {}]
  %s6 = inlined_call_operand.vmem [shape: f32[8,1], index: 6, kind: input, shape index: {}]
  %s7 = inlined_call_operand.vmem [shape: f32[1,1,256], index: 7, kind: output, shape index: {0}]
  %s8 = inlined_call_operand.vmem [shape: f32[1,1,256], index: 8, kind: output, shape index: {1}]
  %9 = xla_tuple %s7, %s8
  %s10 = sld [smem:[#allocation0]]
  $region50: #{forward_train.6} parent=0
    _
  %s12 = ssub.s32 1, %s10
  %s13 = scalar_select 0, %s12, %s10
  // Predicated region
  $region2: #{forward_train.6} parent=0 // pred_check
    _
  $region3: #{forward_train.6} parent=0 // pred_check_branch
    %15 = sbr.rel (0) target = $region5
  $region4: #{forward_train.6} parent=0 // pred_region
    %s16 = sadd.s32 0, 0
    %s17 = smul.u32 2, %s16
    %p18 = scmp.lt.s32.totalorder %s17, 1
    %s19 = scalar_select %p18, %s17, 1
    %s20 = smul.addr %s19, 4
    %s21 = scalar_lea.vmem %s0, %s20
    %s22 = sadd.s32 0, 0
    %s23 = smul.u32 2, %s22
  $region5: #{forward_train.6} parent=0 // pred_fallthru
    _
  // Predicated region
  $region6: #{forward_train.6} parent=0 // pred_check
    _
  $region7: #{forward_train.6} parent=0 // pred_check_branch
    %25 = sbr.rel (0) target = $region9
  $region8: #{forward_train.6} parent=0 // pred_region
    %s26 = sadd.s32 0, 0
    %s27 = smul.u32 2, %s26
    %p28 = scmp.lt.s32.totalorder %s27, 1
    %s29 = scalar_select %p28, %s27, 1
    %s30 = smul.addr %s29, 4
    %s31 = scalar_lea.vmem %s1, %s30
    %s32 = sadd.s32 0, 0
    %s33 = smul.u32 2, %s32
  $region9: #{forward_train.6} parent=0 // pred_fallthru
    _
  // Predicated region
  $region10: #{forward_train.6} parent=0 // pred_check
    _
  $region11: #{forward_train.6} parent=0 // pred_check_branch
    %35 = sbr.rel (0) target = $region13
  $region12: #{forward_train.6} parent=0 // pred_region
    %s36 = sadd.s32 0, 0
    %s37 = smul.u32 2, %s36
    %p38 = scmp.lt.s32.totalorder %s37, 1
    %s39 = scalar_select %p38, %s37, 1
    %s40 = smul.addr %s39, 4
    %s41 = scalar_lea.vmem %s2, %s40
    %s42 = sadd.s32 0, 0
    %s43 = smul.u32 2, %s42
  $region13: #{forward_train.6} parent=0 // pred_fallthru
    _
  // Predicated region
  $region14: #{forward_train.6} parent=0 // pred_check
    _
  $region15: #{forward_train.6} parent=0 // pred_check_branch
    %45 = sbr.rel (0) target = $region17
  $region16: #{forward_train.6} parent=0 // pred_region
    _
  $region17: #{forward_train.6} parent=0 // pred_fallthru
    _
  // Predicated region
  $region18: #{forward_train.6} parent=0 // pred_check
    _
  $region19: #{forward_train.6} parent=0 // pred_check_branch
    %47 = sbr.rel (0) target = $region21
  $region20: #{forward_train.6} parent=0 // pred_region
    _
  $region21: #{forward_train.6} parent=0 // pred_fallthru
    _
  // Predicated region
  $region22: #{forward_train.6} parent=0 // pred_check
    _
  $region23: #{forward_train.6} parent=0 // pred_check_branch
    %49 = sbr.rel (0) target = $region25
  $region24: #{forward_train.6} parent=0 // pred_region
    _
  $region25: #{forward_train.6} parent=0 // pred_fallthru
    _
  // Predicated region
  $region26: #{forward_train.6} parent=0 // pred_check
    _
  $region27: #{forward_train.6} parent=0 // pred_check_branch
    %51 = sbr.rel (0) target = $region29
  $region28: #{forward_train.6} parent=0 // pred_region
    _
  $region29: #{forward_train.6} parent=0 // pred_fallthru
    _
  %s52 = sadd.s32 0, 0
  %s53 = smul.u32 2, %s52
  %p54 = scmp.lt.s32.totalorder %s53, 1
  %s55 = scalar_select %p54, %s53, 1
  %s56 = smul.addr %s55, 4
  %s57 = scalar_lea.vmem %s0, %s56
  %s58 = sadd.s32 0, 0
  %s59 = smul.u32 2, %s58
  %p60 = scmp.lt.s32.totalorder %s59, 1
  %s61 = scalar_select %p60, %s59, 1
  %s62 = smul.addr %s61, 4
  %s63 = scalar_lea.vmem %s1, %s62
  %s64 = sadd.s32 0, 0
  %s65 = smul.u32 2, %s64
  %p66 = scmp.lt.s32.totalorder %s65, 1
  %s67 = scalar_select %p66, %s65, 1
  %s68 = smul.addr %s67, 4
  %s69 = scalar_lea.vmem %s2, %s68
  %s70 = sadd.s32 0, 0
  %s71 = smul.u32 2, %s70
  %p72 = scmp.lt.s32.totalorder %s71, 1
  %s73 = scalar_select %p72, %s71, 1
  %s74 = smul.addr %s73, 4
  %s75 = scalar_lea.vmem %s0, %s74
  %s76 = sadd.s32 0, 0
  %s77 = smul.u32 2, %s76
  %s78 = sadd.s32 0, 0
  %s79 = smul.u32 2, %s78
  %p80 = scmp.lt.s32.totalorder %s79, 1
  %s81 = scalar_select %p80, %s79, 1
  %s82 = smul.addr %s81, 4
  %s83 = scalar_lea.vmem %s1, %s82
  %s84 = sadd.s32 0, 0
  %s85 = smul.u32 2, %s84
  %s86 = sadd.s32 0, 0
  %s87 = smul.u32 2, %s86
  %p88 = scmp.lt.s32.totalorder %s87, 1
  %s89 = scalar_select %p88, %s87, 1
  %s90 = smul.addr %s89, 4
  %s91 = scalar_lea.vmem %s2, %s90
  %s92 = sadd.s32 0, 0
  %s93 = smul.u32 2, %s92
  %p94 = scmp.eq.s32.totalorder 0, 0
  // Predicated region
  $region30: #{forward_train.6} parent=0 // pred_check
    %p95 = pneg %p94
  $region31: #{forward_train.6} parent=0 // pred_check_branch
    %97 = sbr.rel (%p95) target = $region33
  $region32: #{forward_train.6} parent=0 // pred_region
    %v98 = vlaneseq
    %vm99 = vcmp.ge.s32.totalorder %v98, 0
    %vm100 = vcmp.lt.s32.totalorder %v98, 256
    %vm101 = vmand %vm99, %vm100
    %102 = vst.msk [vmem:[%s7] sm:$0x3] %vm101, 0.0
    %103 = vst.msk [vmem:[%s8] sm:$0x3] %vm101, 0.0
  $region33: #{forward_train.6} parent=0 // pred_fallthru
    _
  %v104 = vld [vmem:[%s3] sm:$0xff]
  %v105 = vld [vmem:[%s3 + $0x8] sm:$0xff]
  %v106 = vld [vmem:[%s3 + $0x10] sm:$0xff]
  %v107 = vld [vmem:[%s3 + $0x18] sm:$0xff]
  %v108 = vld [vmem:[%s4] sm:$0xff]
  %v109 = vld [vmem:[%s4 + $0x8] sm:$0xff]
  %v110 = vld [vmem:[%s4 + $0x10] sm:$0xff]
  %v111 = vld [vmem:[%s4 + $0x18] sm:$0xff]
  %v112 = vld [vmem:[%s5] sm:$0xff]
  %v113 = vld [vmem:[%s6] sm:$0xff]
  %v114 = vld [vmem:[%s75] sm:$0x77]
  %v115 = vld [vmem:[%s75 + $0x8] sm:$0x77]
  %v116 = vld [vmem:[%s75 + $0x10] sm:$0x77]
  %v117 = vld [vmem:[%s75 + $0x18] sm:$0x77]
  %v118 = vld [vmem:[%s83] sm:$0xff]
  %v119 = vld [vmem:[%s91] sm:$0xff]
  %v121 = vlaneseq
  %v122 = vshrl.u32 %v121, 7
  %v123 = vsub.s32 0, %v122
  %v124 = vrot.slane %v119, %v123
  %v125 = vlaneseq
  %v126 = vshrl.u32 %v125, 7
  %v127 = vsub.s32 4, %v126
  %v128 = vrot.slane %v119, %v127
  %v131 = vlaneseq
  %v132 = vshrl.u32 %v131, 7
  %v133 = vsub.s32 0, %v132
  %v134 = vrot.slane %v124, %v133
  %v135 = vlaneseq
  %v136 = vshrl.u32 %v135, 7
  %v137 = vsub.s32 0, %v136
  %v138 = vrot.slane %v128, %v137
  %v141 = vcombine.low %v134, %v138
  %v143 = vmul.f32 %v114, %v141
  %v144 = vsub.f32 1.0, %v119
  %v146 = vlaneseq
  %v147 = vshrl.u32 %v146, 7
  %v148 = vsub.s32 0, %v147
  %v149 = vrot.slane %v144, %v148
  %v150 = vlaneseq
  %v151 = vshrl.u32 %v150, 7
  %v152 = vsub.s32 4, %v151
  %v153 = vrot.slane %v144, %v152
  %v156 = vlaneseq
  %v157 = vshrl.u32 %v156, 7
  %v158 = vsub.s32 0, %v157
  %v159 = vrot.slane %v149, %v158
  %v160 = vlaneseq
  %v161 = vshrl.u32 %v160, 7
  %v162 = vsub.s32 0, %v161
  %v163 = vrot.slane %v153, %v162
  %v166 = vcombine.low %v159, %v163
  %v168 = vmul.f32 %v116, %v166
  %v169 = vadd.f32 %v143, %v168
  %vm170 = vcmp.gt.f32.partialorder %v119, 0.5
  %v171 = vrot.slane %v118, 6
  %v172 = vrot.slane %v171, 4
  %v173 = vsel %vm170, %v118, %v172
  %175 = vset.pattern.permute.xlu0 0
  %176 = vperm.xlu0 %175, %v108
  %v177 = vpop.permute.xlu0 %176
  %180 = vset.pattern.permute.xlu0 0
  %181 = vperm.xlu0 %180, %v109
  %v182 = vpop.permute.xlu0 %181
  %185 = vset.pattern.permute.xlu0 0
  %186 = vperm.xlu0 %185, %v110
  %v187 = vpop.permute.xlu0 %186
  %190 = vset.pattern.permute.xlu0 0
  %191 = vperm.xlu0 %190, %v111
  %v192 = vpop.permute.xlu0 %191
  %v195 = vcombine.high %v169, %v169
  %vm196 = vcmask 23552
  %v198 = vsel %vm196, %v104, 0
  %v201 = vsel %vm196, %v105, 0
  %v204 = vsel %vm196, %v106, 0
  %v207 = vsel %vm196, %v107, 0
  %vm209 = vcmask 1042432
  %v210 = vsel %vm209, %v169, 0
  %v212 = vsel %vm209, %v195, 0
  %214 = vmatprep.subr.mxu0 %v212
  %215 = vmatpush1.msra.mxu0 %v210
  %216 = vmatprep.subr.mxu0 0.0
  %217 = vmatpush1.msra.mxu0 0.0
  %218 = vmatprep.subr.mxu0 0.0
  %219 = vmatpush1.msra.mxu0 0.0
  %220 = vmatprep.subr.mxu0 0.0
  %221 = vmatpush1.msra.mxu0 0.0
  %222 = vmatprep.subr.mxu0 0.0
  %223 = vmatpush1.msra.mxu0 0.0
  %224 = vmatprep.subr.mxu0 0.0
  %225 = vmatpush1.msra.mxu0 0.0
  %226 = vmatprep.subr.mxu0 0.0
  %227 = vmatpush1.msra.mxu0 0.0
  %228 = vmatprep.subr.mxu0 0.0
  %229 = vmatpush1.msra.mxu0 0.0
  %230 = vmatprep.subr.mxu0 0.0
  %231 = vmatpush1.msra.mxu0 0.0
  %232 = vmatprep.subr.mxu0 0.0
  %233 = vmatpush1.msra.mxu0 0.0
  %234 = vmatprep.subr.mxu0 0.0
  %235 = vmatpush1.msra.mxu0 0.0
  %236 = vmatprep.subr.mxu0 0.0
  %237 = vmatpush1.msra.mxu0 0.0
  %238 = vmatprep.subr.mxu0 0.0
  %239 = vmatpush1.msra.mxu0 0.0
  %240 = vmatprep.subr.mxu0 0.0
  %241 = vmatpush1.msra.mxu0 0.0
  %242 = vmatprep.subr.mxu0 0.0
  %243 = vmatpush1.msra.mxu0 0.0
  %244 = vmatprep.subr.mxu0 0.0
  %245 = vmatpush1.msra.mxu0 0.0
  %246 = vmatprep.subr.mxu0 0.0
  %247 = vmatpush1.msra.mxu0 0.0
  %248 = vmatprep.subr.mxu0 0.0
  %249 = vmatpush1.msra.mxu0 0.0
  %250 = vmatprep.subr.mxu0 0.0
  %251 = vmatpush1.msra.mxu0 0.0
  %252 = vmatprep.subr.mxu0 0.0
  %253 = vmatpush1.msra.mxu0 0.0
  %254 = vmatprep.subr.mxu0 0.0
  %255 = vmatpush1.msra.mxu0 0.0
  %256 = vmatprep.subr.mxu0 0.0
  %257 = vmatpush1.msra.mxu0 0.0
  %258 = vmatprep.subr.mxu0 0.0
  %259 = vmatpush1.msra.mxu0 0.0
  %260 = vmatprep.subr.mxu0 0.0
  %261 = vmatpush1.msra.mxu0 0.0
  %262 = vmatprep.subr.mxu0 0.0
  %263 = vmatpush1.msra.mxu0 0.0
  %264 = vmatprep.subr.mxu0 0.0
  %265 = vmatpush1.msra.mxu0 0.0
  %266 = vmatprep.subr.mxu0 0.0
  %267 = vmatpush1.msra.mxu0 0.0
  %268 = vmatprep.subr.mxu0 0.0
  %269 = vmatpush1.msra.mxu0 0.0
  %270 = vmatprep.subr.mxu0 0.0
  %271 = vmatpush1.msra.mxu0 0.0
  %272 = vmatprep.subr.mxu0 0.0
  %273 = vmatpush1.msra.mxu0 0.0
  %274 = vmatprep.subr.mxu0 0.0
  %275 = vmatpush1.msra.mxu0 0.0
  %276 = vmatprep.subr.mxu0 0.0
  %277 = vmatpush1.msra.mxu0 0.0
  %278 = vmatprep.mubr.f32.mxu0 0.0
  %279 = vmatmul.mubr.f32.gmra.mrb[0].mxu0 %v198
  %v280 = vpop.f32.mrb[0].mxu0
  %v281 = vadd.f32 %v177, %v280
  %v282 = vpop.f32.mrb[0].mxu0
  %v283 = vadd.f32 %v177, %v282
  %284 = vmatprep.mubr.f32.mxu0 0.0
  %285 = vmatmul.mubr.f32.gmra.mrb[0].mxu0 %v201
  %v286 = vpop.f32.mrb[0].mxu0
  %v287 = vadd.f32 %v182, %v286
  %v288 = vpop.f32.mrb[0].mxu0
  %v289 = vadd.f32 %v182, %v288
  %290 = vmatprep.mubr.f32.mxu0 0.0
  %291 = vmatmul.mubr.f32.gmra.mrb[0].mxu0 %v204
  %v292 = vpop.f32.mrb[0].mxu0
  %v293 = vadd.f32 %v187, %v292
  %v294 = vpop.f32.mrb[0].mxu0
  %v295 = vadd.f32 %v187, %v294
  %296 = vmatprep.mubr.f32.mxu0 0.0
  %297 = vmatmul.mubr.f32.gmra.mrb[0].mxu0 %v207
  %v298 = vpop.f32.mrb[0].mxu0
  %v299 = vadd.f32 %v192, %v298
  %v300 = vpop.f32.mrb[0].mxu0
  %v301 = vadd.f32 %v192, %v300
  %302 = vdwg.mxu0
  %v303 = vmax.f32 %v281, 0.0
  %v304 = vmax.f32 %v283, 0.0
  %v305 = vmax.f32 %v287, 0.0
  %v306 = vmax.f32 %v289, 0.0
  %v307 = vmax.f32 %v293, 0.0
  %v308 = vmax.f32 %v295, 0.0
  %v309 = vmax.f32 %v299, 0.0
  %v310 = vmax.f32 %v301, 0.0
  %312 = vset.pattern.permute.xlu0 0
  %313 = vperm.xlu0 %312, %v113
  %v314 = vpop.permute.xlu0 %313
  %vm316 = vcmask 261120
  %v318 = vsel %vm316, %v112, 0
  %320 = vmatprep.subr.mxu0 %v304
  %321 = vmatpush1.msra.mxu0 %v303
  %322 = vmatprep.subr.mxu0 %v306
  %323 = vmatpush1.msra.mxu0 %v305
  %324 = vmatprep.subr.mxu0 %v308
  %325 = vmatpush1.msra.mxu0 %v307
  %326 = vmatprep.subr.mxu0 %v310
  %327 = vmatpush1.msra.mxu0 %v309
  %328 = vmatprep.subr.mxu0 0.0
  %329 = vmatpush1.msra.mxu0 0.0
  %330 = vmatprep.subr.mxu0 0.0
  %331 = vmatpush1.msra.mxu0 0.0
  %332 = vmatprep.subr.mxu0 0.0
  %333 = vmatpush1.msra.mxu0 0.0
  %334 = vmatprep.subr.mxu0 0.0
  %335 = vmatpush1.msra.mxu0 0.0
  %336 = vmatprep.subr.mxu0 0.0
  %337 = vmatpush1.msra.mxu0 0.0
  %338 = vmatprep.subr.mxu0 0.0
  %339 = vmatpush1.msra.mxu0 0.0
  %340 = vmatprep.subr.mxu0 0.0
  %341 = vmatpush1.msra.mxu0 0.0
  %342 = vmatprep.subr.mxu0 0.0
  %343 = vmatpush1.msra.mxu0 0.0
  %344 = vmatprep.subr.mxu0 0.0
  %345 = vmatpush1.msra.mxu0 0.0
  %346 = vmatprep.subr.mxu0 0.0
  %347 = vmatpush1.msra.mxu0 0.0
  %348 = vmatprep.subr.mxu0 0.0
  %349 = vmatpush1.msra.mxu0 0.0
  %350 = vmatprep.subr.mxu0 0.0
  %351 = vmatpush1.msra.mxu0 0.0
  %352 = vmatprep.subr.mxu0 0.0
  %353 = vmatpush1.msra.mxu0 0.0
  %354 = vmatprep.subr.mxu0 0.0
  %355 = vmatpush1.msra.mxu0 0.0
  %356 = vmatprep.subr.mxu0 0.0
  %357 = vmatpush1.msra.mxu0 0.0
  %358 = vmatprep.subr.mxu0 0.0
  %359 = vmatpush1.msra.mxu0 0.0
  %360 = vmatprep.subr.mxu0 0.0
  %361 = vmatpush1.msra.mxu0 0.0
  %362 = vmatprep.subr.mxu0 0.0
  %363 = vmatpush1.msra.mxu0 0.0
  %364 = vmatprep.subr.mxu0 0.0
  %365 = vmatpush1.msra.mxu0 0.0
  %366 = vmatprep.subr.mxu0 0.0
  %367 = vmatpush1.msra.mxu0 0.0
  %368 = vmatprep.subr.mxu0 0.0
  %369 = vmatpush1.msra.mxu0 0.0
  %370 = vmatprep.subr.mxu0 0.0
  %371 = vmatpush1.msra.mxu0 0.0
  %372 = vmatprep.subr.mxu0 0.0
  %373 = vmatpush1.msra.mxu0 0.0
  %374 = vmatprep.subr.mxu0 0.0
  %375 = vmatpush1.msra.mxu0 0.0
  %376 = vmatprep.subr.mxu0 0.0
  %377 = vmatpush1.msra.mxu0 0.0
  %378 = vmatprep.subr.mxu0 0.0
  %379 = vmatpush1.msra.mxu0 0.0
  %380 = vmatprep.subr.mxu0 0.0
  %381 = vmatpush1.msra.mxu0 0.0
  %382 = vmatprep.subr.mxu0 0.0
  %383 = vmatpush1.msra.mxu0 0.0
  %384 = vmatprep.mubr.f32.mxu0 0.0
  %385 = vmatmul.mubr.f32.gmra.mrb[0].mxu0 %v318
  %v386 = vpop.f32.mrb[0].mxu0
  %v387 = vadd.f32 %v314, %v386
  %v388 = vpop.f32.mrb[0].mxu0
  %v389 = vadd.f32 %v314, %v388
  %390 = vdwg.mxu0
  %v391 = vrot.slane %v387, 4
  %v392 = vmax.f32 %v387, %v391
  %v393 = vrot.slane %v392, 2
  %v394 = vmax.f32 %v392, %v393
  %v395 = vrot.slane %v394, 1
  %v396 = vmax.f32 %v394, %v395
  %v397 = vrot.slane %v389, 4
  %v398 = vmax.f32 %v389, %v397
  %v399 = vrot.slane %v398, 2
  %v400 = vmax.f32 %v398, %v399
  %v401 = vrot.slane %v400, 1
  %v402 = vmax.f32 %v400, %v401
  %v403 = vsub.f32 %v387, %v396
  %v404 = vsub.f32 %v389, %v402
  %v405 = vmul.f32 %v403, 1.442695
  %v406 = vpow.pop %v405
  %v407 = vmul.f32 %v404, 1.442695
  %v408 = vpow.pop %v407
  %v409 = vrot.slane %v406, 4
  %v410 = vadd.f32 %v406, %v409
  %v411 = vrot.slane %v410, 2
  %v412 = vadd.f32 %v410, %v411
  %v413 = vrot.slane %v412, 1
  %v414 = vadd.f32 %v412, %v413
  %v415 = vrot.slane %v408, 4
  %v416 = vadd.f32 %v408, %v415
  %v417 = vrot.slane %v416, 2
  %v418 = vadd.f32 %v416, %v417
  %v419 = vrot.slane %v418, 1
  %v420 = vadd.f32 %v418, %v419
  %v421 = vlog2.pop %v414
  %v422 = vmul.f32 %v421, 0.6931472
  %v423 = vlog2.pop %v420
  %v424 = vmul.f32 %v423, 0.6931472
  %v425 = vadd.f32 %v396, %v422
  %v426 = vadd.f32 %v402, %v424
  %v427 = vlaneseq
  %v428 = vshrl.u32 %v427, 7
  %v429 = vlaneseq
  %v430 = vshrl.u32 %v429, 7
  %v431 = vsub.s32 0, %v430
  %v432 = vrot.slane %v173, %v431
  %v433 = vlaneseq
  %v434 = vshrl.u32 %v433, 7
  %v435 = vsub.s32 4, %v434
  %v436 = vrot.slane %v173, %v435
  %v437 = vlaneseq
  %v438 = vshrl.u32 %v437, 7
  %v439 = vsub.s32 0, %v438
  %v440 = vrot.slane %v432, %v439
  %v441 = vlaneseq
  %v442 = vshrl.u32 %v441, 7
  %v443 = vsub.s32 0, %v442
  %v444 = vrot.slane %v436, %v443
  %vm445 = vcmp.eq.s32.totalorder %v428, %v440
  %vm446 = vcmp.eq.s32.totalorder %v428, %v444
  %v447 = vsel %vm445, %v387, 0.0
  %v448 = vsel %vm446, %v389, 0.0
  %v449 = vrot.slane %v447, 4
  %v450 = vadd.f32 %v447, %v449
  %v451 = vrot.slane %v450, 2
  %v452 = vadd.f32 %v450, %v451
  %v453 = vrot.slane %v452, 1
  %v454 = vadd.f32 %v452, %v453
  %v455 = vrot.slane %v448, 4
  %v456 = vadd.f32 %v448, %v455
  %v457 = vrot.slane %v456, 2
  %v458 = vadd.f32 %v456, %v457
  %v459 = vrot.slane %v458, 1
  %v460 = vadd.f32 %v458, %v459
  %vm461 = vcmp.ne.s32.totalorder %v173, 255
  %v462 = vsel %vm461, 1, 0
  %v463 = vcvt.s32.f32 %v462
  %v464 = vsub.f32 %v425, %v454
  %v465 = vsub.f32 %v426, %v460
  %v467 = vlaneseq
  %v468 = vshrl.u32 %v467, 7
  %v469 = vsub.s32 0, %v468
  %v470 = vrot.slane %v463, %v469
  %v471 = vlaneseq
  %v472 = vshrl.u32 %v471, 7
  %v473 = vsub.s32 4, %v472
  %v474 = vrot.slane %v463, %v473
  %v477 = vmul.f32 %v464, %v470
  %v478 = vmul.f32 %v465, %v474
  %v479 = vadd.f32 %v477, 0.0
  %v480 = vadd.f32 %v478, 0.0
  %v481 = vadd.f32 %v463, 0.0
  %v482 = vlaneseq
  %v483 = vshrl.u32 %v482, 7
  %v484 = vsub.s32 1, %v483
  %v485 = vrot.slane %v119, %v484
  %v486 = vlaneseq
  %v487 = vshrl.u32 %v486, 7
  %v488 = vsub.s32 5, %v487
  %v489 = vrot.slane %v119, %v488
  %v492 = vlaneseq
  %v493 = vshrl.u32 %v492, 7
  %v494 = vsub.s32 1, %v493
  %v495 = vrot.slane %v485, %v494
  %v496 = vlaneseq
  %v497 = vshrl.u32 %v496, 7
  %v498 = vsub.s32 1, %v497
  %v499 = vrot.slane %v489, %v498
  %v502 = vcombine.low %v495, %v499
  %v504 = vmul.f32 %v115, %v502
  %v505 = vlaneseq
  %v506 = vshrl.u32 %v505, 7
  %v507 = vsub.s32 1, %v506
  %v508 = vrot.slane %v144, %v507
  %v509 = vlaneseq
  %v510 = vshrl.u32 %v509, 7
  %v511 = vsub.s32 5, %v510
  %v512 = vrot.slane %v144, %v511
  %v515 = vlaneseq
  %v516 = vshrl.u32 %v515, 7
  %v517 = vsub.s32 1, %v516
  %v518 = vrot.slane %v508, %v517
  %v519 = vlaneseq
  %v520 = vshrl.u32 %v519, 7
  %v521 = vsub.s32 1, %v520
  %v522 = vrot.slane %v512, %v521
  %v525 = vcombine.low %v518, %v522
  %v527 = vmul.f32 %v117, %v525
  %v528 = vadd.f32 %v504, %v527
  %v530 = vcombine.high %v528, %v528
  %v531 = vsel %vm209, %v528, 0
  %v533 = vsel %vm209, %v530, 0
  %535 = vmatprep.subr.mxu0 %v533
  %536 = vmatpush1.msra.mxu0 %v531
  %537 = vmatprep.subr.mxu0 0.0
  %538 = vmatpush1.msra.mxu0 0.0
  %539 = vmatprep.subr.mxu0 0.0
  %540 = vmatpush1.msra.mxu0 0.0
  %541 = vmatprep.subr.mxu0 0.0
  %542 = vmatpush1.msra.mxu0 0.0
  %543 = vmatprep.subr.mxu0 0.0
  %544 = vmatpush1.msra.mxu0 0.0
  %545 = vmatprep.subr.mxu0 0.0
  %546 = vmatpush1.msra.mxu0 0.0
  %547 = vmatprep.subr.mxu0 0.0
  %548 = vmatpush1.msra.mxu0 0.0
  %549 = vmatprep.subr.mxu0 0.0
  %550 = vmatpush1.msra.mxu0 0.0
  %551 = vmatprep.subr.mxu0 0.0
  %552 = vmatpush1.msra.mxu0 0.0
  %553 = vmatprep.subr.mxu0 0.0
  %554 = vmatpush1.msra.mxu0 0.0
  %555 = vmatprep.subr.mxu0 0.0
  %556 = vmatpush1.msra.mxu0 0.0
  %557 = vmatprep.subr.mxu0 0.0
  %558 = vmatpush1.msra.mxu0 0.0
  %559 = vmatprep.subr.mxu0 0.0
  %560 = vmatpush1.msra.mxu0 0.0
  %561 = vmatprep.subr.mxu0 0.0
  %562 = vmatpush1.msra.mxu0 0.0
  %563 = vmatprep.subr.mxu0 0.0
  %564 = vmatpush1.msra.mxu0 0.0
  %565 = vmatprep.subr.mxu0 0.0
  %566 = vmatpush1.msra.mxu0 0.0
  %567 = vmatprep.subr.mxu0 0.0
  %568 = vmatpush1.msra.mxu0 0.0
  %569 = vmatprep.subr.mxu0 0.0
  %570 = vmatpush1.msra.mxu0 0.0
  %571 = vmatprep.subr.mxu0 0.0
  %572 = vmatpush1.msra.mxu0 0.0
  %573 = vmatprep.subr.mxu0 0.0
  %574 = vmatpush1.msra.mxu0 0.0
  %575 = vmatprep.subr.mxu0 0.0
  %576 = vmatpush1.msra.mxu0 0.0
  %577 = vmatprep.subr.mxu0 0.0
  %578 = vmatpush1.msra.mxu0 0.0
  %579 = vmatprep.subr.mxu0 0.0
  %580 = vmatpush1.msra.mxu0 0.0
  %581 = vmatprep.subr.mxu0 0.0
  %582 = vmatpush1.msra.mxu0 0.0
  %583 = vmatprep.subr.mxu0 0.0
  %584 = vmatpush1.msra.mxu0 0.0
  %585 = vmatprep.subr.mxu0 0.0
  %586 = vmatpush1.msra.mxu0 0.0
  %587 = vmatprep.subr.mxu0 0.0
  %588 = vmatpush1.msra.mxu0 0.0
  %589 = vmatprep.subr.mxu0 0.0
  %590 = vmatpush1.msra.mxu0 0.0
  %591 = vmatprep.subr.mxu0 0.0
  %592 = vmatpush1.msra.mxu0 0.0
  %593 = vmatprep.subr.mxu0 0.0
  %594 = vmatpush1.msra.mxu0 0.0
  %595 = vmatprep.subr.mxu0 0.0
  %596 = vmatpush1.msra.mxu0 0.0
  %597 = vmatprep.subr.mxu0 0.0
  %598 = vmatpush1.msra.mxu0 0.0
  %599 = vmatprep.mubr.f32.mxu0 0.0
  %600 = vmatmul.mubr.f32.gmra.mrb[0].mxu0 %v198
  %v601 = vpop.f32.mrb[0].mxu0
  %v602 = vadd.f32 %v177, %v601
  %v603 = vpop.f32.mrb[0].mxu0
  %v604 = vadd.f32 %v177, %v603
  %605 = vmatprep.mubr.f32.mxu0 0.0
  %606 = vmatmul.mubr.f32.gmra.mrb[0].mxu0 %v201
  %v607 = vpop.f32.mrb[0].mxu0
  %v608 = vadd.f32 %v182, %v607
  %v609 = vpop.f32.mrb[0].mxu0
  %v610 = vadd.f32 %v182, %v609
  %611 = vmatprep.mubr.f32.mxu0 0.0
  %612 = vmatmul.mubr.f32.gmra.mrb[0].mxu0 %v204
  %v613 = vpop.f32.mrb[0].mxu0
  %v614 = vadd.f32 %v187, %v613
  %v615 = vpop.f32.mrb[0].mxu0
  %v616 = vadd.f32 %v187, %v615
  %617 = vmatprep.mubr.f32.mxu0 0.0
  %618 = vmatmul.mubr.f32.gmra.mrb[0].mxu0 %v207
  %v619 = vpop.f32.mrb[0].mxu0
  %v620 = vadd.f32 %v192, %v619
  %v621 = vpop.f32.mrb[0].mxu0
  %v622 = vadd.f32 %v192, %v621
  %623 = vdwg.mxu0
  %v624 = vmax.f32 %v602, 0.0
  %v625 = vmax.f32 %v604, 0.0
  %v626 = vmax.f32 %v608, 0.0
  %v627 = vmax.f32 %v610, 0.0
  %v628 = vmax.f32 %v614, 0.0
  %v629 = vmax.f32 %v616, 0.0
  %v630 = vmax.f32 %v620, 0.0
  %v631 = vmax.f32 %v622, 0.0
  %632 = vmatprep.subr.mxu0 %v625
  %633 = vmatpush1.msra.mxu0 %v624
  %634 = vmatprep.subr.mxu0 %v627
  %635 = vmatpush1.msra.mxu0 %v626
  %636 = vmatprep.subr.mxu0 %v629
  %637 = vmatpush1.msra.mxu0 %v628
  %638 = vmatprep.subr.mxu0 %v631
  %639 = vmatpush1.msra.mxu0 %v630
  %640 = vmatprep.subr.mxu0 0.0
  %641 = vmatpush1.msra.mxu0 0.0
  %642 = vmatprep.subr.mxu0 0.0
  %643 = vmatpush1.msra.mxu0 0.0
  %644 = vmatprep.subr.mxu0 0.0
  %645 = vmatpush1.msra.mxu0 0.0
  %646 = vmatprep.subr.mxu0 0.0
  %647 = vmatpush1.msra.mxu0 0.0
  %648 = vmatprep.subr.mxu0 0.0
  %649 = vmatpush1.msra.mxu0 0.0
  %650 = vmatprep.subr.mxu0 0.0
  %651 = vmatpush1.msra.mxu0 0.0
  %652 = vmatprep.subr.mxu0 0.0
  %653 = vmatpush1.msra.mxu0 0.0
  %654 = vmatprep.subr.mxu0 0.0
  %655 = vmatpush1.msra.mxu0 0.0
  %656 = vmatprep.subr.mxu0 0.0
  %657 = vmatpush1.msra.mxu0 0.0
  %658 = vmatprep.subr.mxu0 0.0
  %659 = vmatpush1.msra.mxu0 0.0
  %660 = vmatprep.subr.mxu0 0.0
  %661 = vmatpush1.msra.mxu0 0.0
  %662 = vmatprep.subr.mxu0 0.0
  %663 = vmatpush1.msra.mxu0 0.0
  %664 = vmatprep.subr.mxu0 0.0
  %665 = vmatpush1.msra.mxu0 0.0
  %666 = vmatprep.subr.mxu0 0.0
  %667 = vmatpush1.msra.mxu0 0.0
  %668 = vmatprep.subr.mxu0 0.0
  %669 = vmatpush1.msra.mxu0 0.0
  %670 = vmatprep.subr.mxu0 0.0
  %671 = vmatpush1.msra.mxu0 0.0
  %672 = vmatprep.subr.mxu0 0.0
  %673 = vmatpush1.msra.mxu0 0.0
  %674 = vmatprep.subr.mxu0 0.0
  %675 = vmatpush1.msra.mxu0 0.0
  %676 = vmatprep.subr.mxu0 0.0
  %677 = vmatpush1.msra.mxu0 0.0
  %678 = vmatprep.subr.mxu0 0.0
  %679 = vmatpush1.msra.mxu0 0.0
  %680 = vmatprep.subr.mxu0 0.0
  %681 = vmatpush1.msra.mxu0 0.0
  %682 = vmatprep.subr.mxu0 0.0
  %683 = vmatpush1.msra.mxu0 0.0
  %684 = vmatprep.subr.mxu0 0.0
  %685 = vmatpush1.msra.mxu0 0.0
  %686 = vmatprep.subr.mxu0 0.0
  %687 = vmatpush1.msra.mxu0 0.0
  %688 = vmatprep.subr.mxu0 0.0
  %689 = vmatpush1.msra.mxu0 0.0
  %690 = vmatprep.subr.mxu0 0.0
  %691 = vmatpush1.msra.mxu0 0.0
  %692 = vmatprep.subr.mxu0 0.0
  %693 = vmatpush1.msra.mxu0 0.0
  %694 = vmatprep.subr.mxu0 0.0
  %695 = vmatpush1.msra.mxu0 0.0
  %696 = vmatprep.mubr.f32.mxu0 0.0
  %697 = vmatmul.mubr.f32.gmra.mrb[0].mxu0 %v318
  %v698 = vpop.f32.mrb[0].mxu0
  %v699 = vadd.f32 %v314, %v698
  %v700 = vpop.f32.mrb[0].mxu0
  %v701 = vadd.f32 %v314, %v700
  %702 = vdwg.mxu0
  %v703 = vrot.slane %v699, 4
  %v704 = vmax.f32 %v699, %v703
  %v705 = vrot.slane %v704, 2
  %v706 = vmax.f32 %v704, %v705
  %v707 = vrot.slane %v706, 1
  %v708 = vmax.f32 %v706, %v707
  %v709 = vrot.slane %v701, 4
  %v710 = vmax.f32 %v701, %v709
  %v711 = vrot.slane %v710, 2
  %v712 = vmax.f32 %v710, %v711
  %v713 = vrot.slane %v712, 1
  %v714 = vmax.f32 %v712, %v713
  %v715 = vsub.f32 %v699, %v708
  %v716 = vsub.f32 %v701, %v714
  %v717 = vmul.f32 %v715, 1.442695
  %v718 = vpow.pop %v717
  %v719 = vmul.f32 %v716, 1.442695
  %v720 = vpow.pop %v719
  %v721 = vrot.slane %v718, 4
  %v722 = vadd.f32 %v718, %v721
  %v723 = vrot.slane %v722, 2
  %v724 = vadd.f32 %v722, %v723
  %v725 = vrot.slane %v724, 1
  %v726 = vadd.f32 %v724, %v725
  %v727 = vrot.slane %v720, 4
  %v728 = vadd.f32 %v720, %v727
  %v729 = vrot.slane %v728, 2
  %v730 = vadd.f32 %v728, %v729
  %v731 = vrot.slane %v730, 1
  %v732 = vadd.f32 %v730, %v731
  %v733 = vlog2.pop %v726
  %v734 = vmul.f32 %v733, 0.6931472
  %v735 = vlog2.pop %v732
  %v736 = vmul.f32 %v735, 0.6931472
  %v737 = vadd.f32 %v708, %v734
  %v738 = vadd.f32 %v714, %v736
  %v739 = vlaneseq
  %v740 = vshrl.u32 %v739, 7
  %v741 = vsub.s32 1, %v740
  %v742 = vrot.slane %v173, %v741
  %v743 = vlaneseq
  %v744 = vshrl.u32 %v743, 7
  %v745 = vsub.s32 5, %v744
  %v746 = vrot.slane %v173, %v745
  %v747 = vlaneseq
  %v748 = vshrl.u32 %v747, 7
  %v749 = vsub.s32 1, %v748
  %v750 = vrot.slane %v742, %v749
  %v751 = vlaneseq
  %v752 = vshrl.u32 %v751, 7
  %v753 = vsub.s32 1, %v752
  %v754 = vrot.slane %v746, %v753
  %vm755 = vcmp.eq.s32.totalorder %v428, %v750
  %vm756 = vcmp.eq.s32.totalorder %v428, %v754
  %v757 = vsel %vm755, %v699, 0.0
  %v758 = vsel %vm756, %v701, 0.0
  %v759 = vrot.slane %v757, 4
  %v760 = vadd.f32 %v757, %v759
  %v761 = vrot.slane %v760, 2
  %v762 = vadd.f32 %v760, %v761
  %v763 = vrot.slane %v762, 1
  %v764 = vadd.f32 %v762, %v763
  %v765 = vrot.slane %v758, 4
  %v766 = vadd.f32 %v758, %v765
  %v767 = vrot.slane %v766, 2
  %v768 = vadd.f32 %v766, %v767
  %v769 = vrot.slane %v768, 1
  %v770 = vadd.f32 %v768, %v769
  %v771 = vsub.f32 %v737, %v764
  %v772 = vsub.f32 %v738, %v770
  %v773 = vlaneseq
  %v774 = vshrl.u32 %v773, 7
  %v775 = vsub.s32 1, %v774
  %v776 = vrot.slane %v463, %v775
  %v777 = vlaneseq
  %v778 = vshrl.u32 %v777, 7
  %v779 = vsub.s32 5, %v778
  %v780 = vrot.slane %v463, %v779
  %v783 = vmul.f32 %v771, %v776
  %v784 = vmul.f32 %v772, %v780
  %v785 = vadd.f32 %v479, %v783
  %v786 = vadd.f32 %v480, %v784
  %v787 = vrot.slane %v463, 5
  %v788 = vrot.slane %v787, 4
  %v790 = vadd.f32 %v481, %v788
  %v791 = vlaneseq
  %v792 = vshrl.u32 %v791, 7
  %v793 = vsub.s32 2, %v792
  %v794 = vrot.slane %v119, %v793
  %v795 = vlaneseq
  %v796 = vshrl.u32 %v795, 7
  %v797 = vsub.s32 6, %v796
  %v798 = vrot.slane %v119, %v797
  %v801 = vlaneseq
  %v802 = vshrl.u32 %v801, 7
  %v803 = vsub.s32 2, %v802
  %v804 = vrot.slane %v794, %v803
  %v805 = vlaneseq
  %v806 = vshrl.u32 %v805, 7
  %v807 = vsub.s32 2, %v806
  %v808 = vrot.slane %v798, %v807
  %v811 = vcombine.low %v804, %v808
  %v813 = vmul.f32 %v116, %v811
  %v814 = vlaneseq
  %v815 = vshrl.u32 %v814, 7
  %v816 = vsub.s32 2, %v815
  %v817 = vrot.slane %v144, %v816
  %v818 = vlaneseq
  %v819 = vshrl.u32 %v818, 7
  %v820 = vsub.s32 6, %v819
  %v821 = vrot.slane %v144, %v820
  %v824 = vlaneseq
  %v825 = vshrl.u32 %v824, 7
  %v826 = vsub.s32 2, %v825
  %v827 = vrot.slane %v817, %v826
  %v828 = vlaneseq
  %v829 = vshrl.u32 %v828, 7
  %v830 = vsub.s32 2, %v829
  %v831 = vrot.slane %v821, %v830
  %v834 = vcombine.low %v827, %v831
  %v836 = vmul.f32 %v114, %v834
  %v837 = vadd.f32 %v813, %v836
  %v838 = vsel %vm170, %v118, %v171
  %v840 = vcombine.high %v837, %v837
  %v841 = vsel %vm209, %v837, 0
  %v843 = vsel %vm209, %v840, 0
  %845 = vmatprep.subr.mxu0 %v843
  %846 = vmatpush1.msra.mxu0 %v841
  %847 = vmatprep.subr.mxu0 0.0
  %848 = vmatpush1.msra.mxu0 0.0
  %849 = vmatprep.subr.mxu0 0.0
  %850 = vmatpush1.msra.mxu0 0.0
  %851 = vmatprep.subr.mxu0 0.0
  %852 = vmatpush1.msra.mxu0 0.0
  %853 = vmatprep.subr.mxu0 0.0
  %854 = vmatpush1.msra.mxu0 0.0
  %855 = vmatprep.subr.mxu0 0.0
  %856 = vmatpush1.msra.mxu0 0.0
  %857 = vmatprep.subr.mxu0 0.0
  %858 = vmatpush1.msra.mxu0 0.0
  %859 = vmatprep.subr.mxu0 0.0
  %860 = vmatpush1.msra.mxu0 0.0
  %861 = vmatprep.subr.mxu0 0.0
  %862 = vmatpush1.msra.mxu0 0.0
  %863 = vmatprep.subr.mxu0 0.0
  %864 = vmatpush1.msra.mxu0 0.0
  %865 = vmatprep.subr.mxu0 0.0
  %866 = vmatpush1.msra.mxu0 0.0
  %867 = vmatprep.subr.mxu0 0.0
  %868 = vmatpush1.msra.mxu0 0.0
  %869 = vmatprep.subr.mxu0 0.0
  %870 = vmatpush1.msra.mxu0 0.0
  %871 = vmatprep.subr.mxu0 0.0
  %872 = vmatpush1.msra.mxu0 0.0
  %873 = vmatprep.subr.mxu0 0.0
  %874 = vmatpush1.msra.mxu0 0.0
  %875 = vmatprep.subr.mxu0 0.0
  %876 = vmatpush1.msra.mxu0 0.0
  %877 = vmatprep.subr.mxu0 0.0
  %878 = vmatpush1.msra.mxu0 0.0
  %879 = vmatprep.subr.mxu0 0.0
  %880 = vmatpush1.msra.mxu0 0.0
  %881 = vmatprep.subr.mxu0 0.0
  %882 = vmatpush1.msra.mxu0 0.0
  %883 = vmatprep.subr.mxu0 0.0
  %884 = vmatpush1.msra.mxu0 0.0
  %885 = vmatprep.subr.mxu0 0.0
  %886 = vmatpush1.msra.mxu0 0.0
  %887 = vmatprep.subr.mxu0 0.0
  %888 = vmatpush1.msra.mxu0 0.0
  %889 = vmatprep.subr.mxu0 0.0
  %890 = vmatpush1.msra.mxu0 0.0
  %891 = vmatprep.subr.mxu0 0.0
  %892 = vmatpush1.msra.mxu0 0.0
  %893 = vmatprep.subr.mxu0 0.0
  %894 = vmatpush1.msra.mxu0 0.0
  %895 = vmatprep.subr.mxu0 0.0
  %896 = vmatpush1.msra.mxu0 0.0
  %897 = vmatprep.subr.mxu0 0.0
  %898 = vmatpush1.msra.mxu0 0.0
  %899 = vmatprep.subr.mxu0 0.0
  %900 = vmatpush1.msra.mxu0 0.0
  %901 = vmatprep.subr.mxu0 0.0
  %902 = vmatpush1.msra.mxu0 0.0
  %903 = vmatprep.subr.mxu0 0.0
  %904 = vmatpush1.msra.mxu0 0.0
  %905 = vmatprep.subr.mxu0 0.0
  %906 = vmatpush1.msra.mxu0 0.0
  %907 = vmatprep.subr.mxu0 0.0
  %908 = vmatpush1.msra.mxu0 0.0
  %909 = vmatprep.mubr.f32.mxu0 0.0
  %910 = vmatmul.mubr.f32.gmra.mrb[0].mxu0 %v198
  %v911 = vpop.f32.mrb[0].mxu0
  %v912 = vadd.f32 %v177, %v911
  %v913 = vpop.f32.mrb[0].mxu0
  %v914 = vadd.f32 %v177, %v913
  %915 = vmatprep.mubr.f32.mxu0 0.0
  %916 = vmatmul.mubr.f32.gmra.mrb[0].mxu0 %v201
  %v917 = vpop.f32.mrb[0].mxu0
  %v918 = vadd.f32 %v182, %v917
  %v919 = vpop.f32.mrb[0].mxu0
  %v920 = vadd.f32 %v182, %v919
  %921 = vmatprep.mubr.f32.mxu0 0.0
  %922 = vmatmul.mubr.f32.gmra.mrb[0].mxu0 %v204
  %v923 = vpop.f32.mrb[0].mxu0
  %v924 = vadd.f32 %v187, %v923
  %v925 = vpop.f32.mrb[0].mxu0
  %v926 = vadd.f32 %v187, %v925
  %927 = vmatprep.mubr.f32.mxu0 0.0
  %928 = vmatmul.mubr.f32.gmra.mrb[0].mxu0 %v207
  %v929 = vpop.f32.mrb[0].mxu0
  %v930 = vadd.f32 %v192, %v929
  %v931 = vpop.f32.mrb[0].mxu0
  %v932 = vadd.f32 %v192, %v931
  %933 = vdwg.mxu0
  %v934 = vmax.f32 %v912, 0.0
  %v935 = vmax.f32 %v914, 0.0
  %v936 = vmax.f32 %v918, 0.0
  %v937 = vmax.f32 %v920, 0.0
  %v938 = vmax.f32 %v924, 0.0
  %v939 = vmax.f32 %v926, 0.0
  %v940 = vmax.f32 %v930, 0.0
  %v941 = vmax.f32 %v932, 0.0
  %942 = vmatprep.subr.mxu0 %v935
  %943 = vmatpush1.msra.mxu0 %v934
  %944 = vmatprep.subr.mxu0 %v937
  %945 = vmatpush1.msra.mxu0 %v936
  %946 = vmatprep.subr.mxu0 %v939
  %947 = vmatpush1.msra.mxu0 %v938
  %948 = vmatprep.subr.mxu0 %v941
  %949 = vmatpush1.msra.mxu0 %v940
  %950 = vmatprep.subr.mxu0 0.0
  %951 = vmatpush1.msra.mxu0 0.0
  %952 = vmatprep.subr.mxu0 0.0
  %953 = vmatpush1.msra.mxu0 0.0
  %954 = vmatprep.subr.mxu0 0.0
  %955 = vmatpush1.msra.mxu0 0.0
  %956 = vmatprep.subr.mxu0 0.0
  %957 = vmatpush1.msra.mxu0 0.0
  %958 = vmatprep.subr.mxu0 0.0
  %959 = vmatpush1.msra.mxu0 0.0
  %960 = vmatprep.subr.mxu0 0.0
  %961 = vmatpush1.msra.mxu0 0.0
  %962 = vmatprep.subr.mxu0 0.0
  %963 = vmatpush1.msra.mxu0 0.0
  %964 = vmatprep.subr.mxu0 0.0
  %965 = vmatpush1.msra.mxu0 0.0
  %966 = vmatprep.subr.mxu0 0.0
  %967 = vmatpush1.msra.mxu0 0.0
  %968 = vmatprep.subr.mxu0 0.0
  %969 = vmatpush1.msra.mxu0 0.0
  %970 = vmatprep.subr.mxu0 0.0
  %971 = vmatpush1.msra.mxu0 0.0
  %972 = vmatprep.subr.mxu0 0.0
  %973 = vmatpush1.msra.mxu0 0.0
  %974 = vmatprep.subr.mxu0 0.0
  %975 = vmatpush1.msra.mxu0 0.0
  %976 = vmatprep.subr.mxu0 0.0
  %977 = vmatpush1.msra.mxu0 0.0
  %978 = vmatprep.subr.mxu0 0.0
  %979 = vmatpush1.msra.mxu0 0.0
  %980 = vmatprep.subr.mxu0 0.0
  %981 = vmatpush1.msra.mxu0 0.0
  %982 = vmatprep.subr.mxu0 0.0
  %983 = vmatpush1.msra.mxu0 0.0
  %984 = vmatprep.subr.mxu0 0.0
  %985 = vmatpush1.msra.mxu0 0.0
  %986 = vmatprep.subr.mxu0 0.0
  %987 = vmatpush1.msra.mxu0 0.0
  %988 = vmatprep.subr.mxu0 0.0
  %989 = vmatpush1.msra.mxu0 0.0
  %990 = vmatprep.subr.mxu0 0.0
  %991 = vmatpush1.msra.mxu0 0.0
  %992 = vmatprep.subr.mxu0 0.0
  %993 = vmatpush1.msra.mxu0 0.0
  %994 = vmatprep.subr.mxu0 0.0
  %995 = vmatpush1.msra.mxu0 0.0
  %996 = vmatprep.subr.mxu0 0.0
  %997 = vmatpush1.msra.mxu0 0.0
  %998 = vmatprep.subr.mxu0 0.0
  %999 = vmatpush1.msra.mxu0 0.0
  %1000 = vmatprep.subr.mxu0 0.0
  %1001 = vmatpush1.msra.mxu0 0.0
  %1002 = vmatprep.subr.mxu0 0.0
  %1003 = vmatpush1.msra.mxu0 0.0
  %1004 = vmatprep.subr.mxu0 0.0
  %1005 = vmatpush1.msra.mxu0 0.0
  %1006 = vmatprep.mubr.f32.mxu0 0.0
  %1007 = vmatmul.mubr.f32.gmra.mrb[0].mxu0 %v318
  %v1008 = vpop.f32.mrb[0].mxu0
  %v1009 = vadd.f32 %v314, %v1008
  %v1010 = vpop.f32.mrb[0].mxu0
  %v1011 = vadd.f32 %v314, %v1010
  %1012 = vdwg.mxu0
  %v1013 = vrot.slane %v1009, 4
  %v1014 = vmax.f32 %v1009, %v1013
  %v1015 = vrot.slane %v1014, 2
  %v1016 = vmax.f32 %v1014, %v1015
  %v1017 = vrot.slane %v1016, 1
  %v1018 = vmax.f32 %v1016, %v1017
  %v1019 = vrot.slane %v1011, 4
  %v1020 = vmax.f32 %v1011, %v1019
  %v1021 = vrot.slane %v1020, 2
  %v1022 = vmax.f32 %v1020, %v1021
  %v1023 = vrot.slane %v1022, 1
  %v1024 = vmax.f32 %v1022, %v1023
  %v1025 = vsub.f32 %v1009, %v1018
  %v1026 = vsub.f32 %v1011, %v1024
  %v1027 = vmul.f32 %v1025, 1.442695
  %v1028 = vpow.pop %v1027
  %v1029 = vmul.f32 %v1026, 1.442695
  %v1030 = vpow.pop %v1029
  %v1031 = vrot.slane %v1028, 4
  %v1032 = vadd.f32 %v1028, %v1031
  %v1033 = vrot.slane %v1032, 2
  %v1034 = vadd.f32 %v1032, %v1033
  %v1035 = vrot.slane %v1034, 1
  %v1036 = vadd.f32 %v1034, %v1035
  %v1037 = vrot.slane %v1030, 4
  %v1038 = vadd.f32 %v1030, %v1037
  %v1039 = vrot.slane %v1038, 2
  %v1040 = vadd.f32 %v1038, %v1039
  %v1041 = vrot.slane %v1040, 1
  %v1042 = vadd.f32 %v1040, %v1041
  %v1043 = vlog2.pop %v1036
  %v1044 = vmul.f32 %v1043, 0.6931472
  %v1045 = vlog2.pop %v1042
  %v1046 = vmul.f32 %v1045, 0.6931472
  %v1047 = vadd.f32 %v1018, %v1044
  %v1048 = vadd.f32 %v1024, %v1046
  %v1049 = vlaneseq
  %v1050 = vshrl.u32 %v1049, 7
  %v1051 = vsub.s32 2, %v1050
  %v1052 = vrot.slane %v838, %v1051
  %v1053 = vlaneseq
  %v1054 = vshrl.u32 %v1053, 7
  %v1055 = vsub.s32 6, %v1054
  %v1056 = vrot.slane %v838, %v1055
  %v1057 = vlaneseq
  %v1058 = vshrl.u32 %v1057, 7
  %v1059 = vsub.s32 2, %v1058
  %v1060 = vrot.slane %v1052, %v1059
  %v1061 = vlaneseq
  %v1062 = vshrl.u32 %v1061, 7
  %v1063 = vsub.s32 2, %v1062
  %v1064 = vrot.slane %v1056, %v1063
  %vm1065 = vcmp.eq.s32.totalorder %v428, %v1060
  %vm1066 = vcmp.eq.s32.totalorder %v428, %v1064
  %v1067 = vsel %vm1065, %v1009, 0.0
  %v1068 = vsel %vm1066, %v1011, 0.0
  %v1069 = vrot.slane %v1067, 4
  %v1070 = vadd.f32 %v1067, %v1069
  %v1071 = vrot.slane %v1070, 2
  %v1072 = vadd.f32 %v1070, %v1071
  %v1073 = vrot.slane %v1072, 1
  %v1074 = vadd.f32 %v1072, %v1073
  %v1075 = vrot.slane %v1068, 4
  %v1076 = vadd.f32 %v1068, %v1075
  %v1077 = vrot.slane %v1076, 2
  %v1078 = vadd.f32 %v1076, %v1077
  %v1079 = vrot.slane %v1078, 1
  %v1080 = vadd.f32 %v1078, %v1079
  %vm1081 = vcmp.ne.s32.totalorder %v838, 255
  %v1082 = vsel %vm1081, 1, 0
  %v1083 = vcvt.s32.f32 %v1082
  %v1084 = vsub.f32 %v1047, %v1074
  %v1085 = vsub.f32 %v1048, %v1080
  %v1087 = vlaneseq
  %v1088 = vshrl.u32 %v1087, 7
  %v1089 = vsub.s32 2, %v1088
  %v1090 = vrot.slane %v1083, %v1089
  %v1091 = vlaneseq
  %v1092 = vshrl.u32 %v1091, 7
  %v1093 = vsub.s32 6, %v1092
  %v1094 = vrot.slane %v1083, %v1093
  %v1097 = vmul.f32 %v1084, %v1090
  %v1098 = vmul.f32 %v1085, %v1094
  %v1099 = vadd.f32 %v785, %v1097
  %v1100 = vadd.f32 %v786, %v1098
  %v1101 = vrot.slane %v1083, 6
  %v1102 = vrot.slane %v1101, 4
  %v1104 = vadd.f32 %v790, %v1102
  %v1105 = vlaneseq
  %v1106 = vshrl.u32 %v1105, 7
  %v1107 = vsub.s32 3, %v1106
  %v1108 = vrot.slane %v119, %v1107
  %v1109 = vlaneseq
  %v1110 = vshrl.u32 %v1109, 7
  %v1111 = vsub.s32 7, %v1110
  %v1112 = vrot.slane %v119, %v1111
  %v1115 = vlaneseq
  %v1116 = vshrl.u32 %v1115, 7
  %v1117 = vsub.s32 3, %v1116
  %v1118 = vrot.slane %v1108, %v1117
  %v1119 = vlaneseq
  %v1120 = vshrl.u32 %v1119, 7
  %v1121 = vsub.s32 3, %v1120
  %v1122 = vrot.slane %v1112, %v1121
  %v1125 = vcombine.low %v1118, %v1122
  %v1127 = vmul.f32 %v117, %v1125
  %v1128 = vlaneseq
  %v1129 = vshrl.u32 %v1128, 7
  %v1130 = vsub.s32 3, %v1129
  %v1131 = vrot.slane %v144, %v1130
  %v1132 = vlaneseq
  %v1133 = vshrl.u32 %v1132, 7
  %v1134 = vsub.s32 7, %v1133
  %v1135 = vrot.slane %v144, %v1134
  %v1138 = vlaneseq
  %v1139 = vshrl.u32 %v1138, 7
  %v1140 = vsub.s32 3, %v1139
  %v1141 = vrot.slane %v1131, %v1140
  %v1142 = vlaneseq
  %v1143 = vshrl.u32 %v1142, 7
  %v1144 = vsub.s32 3, %v1143
  %v1145 = vrot.slane %v1135, %v1144
  %v1148 = vcombine.low %v1141, %v1145
  %v1150 = vmul.f32 %v115, %v1148
  %v1151 = vadd.f32 %v1127, %v1150
  %v1153 = vcombine.high %v1151, %v1151
  %v1154 = vsel %vm209, %v1151, 0
  %v1156 = vsel %vm209, %v1153, 0
  %1158 = vmatprep.subr.mxu0 %v1156
  %1159 = vmatpush1.msra.mxu0 %v1154
  %1160 = vmatprep.subr.mxu0 0.0
  %1161 = vmatpush1.msra.mxu0 0.0
  %1162 = vmatprep.subr.mxu0 0.0
  %1163 = vmatpush1.msra.mxu0 0.0
  %1164 = vmatprep.subr.mxu0 0.0
  %1165 = vmatpush1.msra.mxu0 0.0
  %1166 = vmatprep.subr.mxu0 0.0
  %1167 = vmatpush1.msra.mxu0 0.0
  %1168 = vmatprep.subr.mxu0 0.0
  %1169 = vmatpush1.msra.mxu0 0.0
  %1170 = vmatprep.subr.mxu0 0.0
  %1171 = vmatpush1.msra.mxu0 0.0
  %1172 = vmatprep.subr.mxu0 0.0
  %1173 = vmatpush1.msra.mxu0 0.0
  %1174 = vmatprep.subr.mxu0 0.0
  %1175 = vmatpush1.msra.mxu0 0.0
  %1176 = vmatprep.subr.mxu0 0.0
  %1177 = vmatpush1.msra.mxu0 0.0
  %1178 = vmatprep.subr.mxu0 0.0
  %1179 = vmatpush1.msra.mxu0 0.0
  %1180 = vmatprep.subr.mxu0 0.0
  %1181 = vmatpush1.msra.mxu0 0.0
  %1182 = vmatprep.subr.mxu0 0.0
  %1183 = vmatpush1.msra.mxu0 0.0
  %1184 = vmatprep.subr.mxu0 0.0
  %1185 = vmatpush1.msra.mxu0 0.0
  %1186 = vmatprep.subr.mxu0 0.0
  %1187 = vmatpush1.msra.mxu0 0.0
  %1188 = vmatprep.subr.mxu0 0.0
  %1189 = vmatpush1.msra.mxu0 0.0
  %1190 = vmatprep.subr.mxu0 0.0
  %1191 = vmatpush1.msra.mxu0 0.0
  %1192 = vmatprep.subr.mxu0 0.0
  %1193 = vmatpush1.msra.mxu0 0.0
  %1194 = vmatprep.subr.mxu0 0.0
  %1195 = vmatpush1.msra.mxu0 0.0
  %1196 = vmatprep.subr.mxu0 0.0
  %1197 = vmatpush1.msra.mxu0 0.0
  %1198 = vmatprep.subr.mxu0 0.0
  %1199 = vmatpush1.msra.mxu0 0.0
  %1200 = vmatprep.subr.mxu0 0.0
  %1201 = vmatpush1.msra.mxu0 0.0
  %1202 = vmatprep.subr.mxu0 0.0
  %1203 = vmatpush1.msra.mxu0 0.0
  %1204 = vmatprep.subr.mxu0 0.0
  %1205 = vmatpush1.msra.mxu0 0.0
  %1206 = vmatprep.subr.mxu0 0.0
  %1207 = vmatpush1.msra.mxu0 0.0
  %1208 = vmatprep.subr.mxu0 0.0
  %1209 = vmatpush1.msra.mxu0 0.0
  %1210 = vmatprep.subr.mxu0 0.0
  %1211 = vmatpush1.msra.mxu0 0.0
  %1212 = vmatprep.subr.mxu0 0.0
  %1213 = vmatpush1.msra.mxu0 0.0
  %1214 = vmatprep.subr.mxu0 0.0
  %1215 = vmatpush1.msra.mxu0 0.0
  %1216 = vmatprep.subr.mxu0 0.0
  %1217 = vmatpush1.msra.mxu0 0.0
  %1218 = vmatprep.subr.mxu0 0.0
  %1219 = vmatpush1.msra.mxu0 0.0
  %1220 = vmatprep.subr.mxu0 0.0
  %1221 = vmatpush1.msra.mxu0 0.0
  %1222 = vmatprep.mubr.f32.mxu0 0.0
  %1223 = vmatmul.mubr.f32.gmra.mrb[0].mxu0 %v198
  %v1224 = vpop.f32.mrb[0].mxu0
  %v1225 = vadd.f32 %v177, %v1224
  %v1226 = vpop.f32.mrb[0].mxu0
  %v1227 = vadd.f32 %v177, %v1226
  %1228 = vmatprep.mubr.f32.mxu0 0.0
  %1229 = vmatmul.mubr.f32.gmra.mrb[0].mxu0 %v201
  %v1230 = vpop.f32.mrb[0].mxu0
  %v1231 = vadd.f32 %v182, %v1230
  %v1232 = vpop.f32.mrb[0].mxu0
  %v1233 = vadd.f32 %v182, %v1232
  %1234 = vmatprep.mubr.f32.mxu0 0.0
  %1235 = vmatmul.mubr.f32.gmra.mrb[0].mxu0 %v204
  %v1236 = vpop.f32.mrb[0].mxu0
  %v1237 = vadd.f32 %v187, %v1236
  %v1238 = vpop.f32.mrb[0].mxu0
  %v1239 = vadd.f32 %v187, %v1238
  %1240 = vmatprep.mubr.f32.mxu0 0.0
  %1241 = vmatmul.mubr.f32.gmra.mrb[0].mxu0 %v207
  %v1242 = vpop.f32.mrb[0].mxu0
  %v1243 = vadd.f32 %v192, %v1242
  %v1244 = vpop.f32.mrb[0].mxu0
  %v1245 = vadd.f32 %v192, %v1244
  %1246 = vdwg.mxu0
  %v1247 = vmax.f32 %v1225, 0.0
  %v1248 = vmax.f32 %v1227, 0.0
  %v1249 = vmax.f32 %v1231, 0.0
  %v1250 = vmax.f32 %v1233, 0.0
  %v1251 = vmax.f32 %v1237, 0.0
  %v1252 = vmax.f32 %v1239, 0.0
  %v1253 = vmax.f32 %v1243, 0.0
  %v1254 = vmax.f32 %v1245, 0.0
  %1255 = vmatprep.subr.mxu0 %v1248
  %1256 = vmatpush1.msra.mxu0 %v1247
  %1257 = vmatprep.subr.mxu0 %v1250
  %1258 = vmatpush1.msra.mxu0 %v1249
  %1259 = vmatprep.subr.mxu0 %v1252
  %1260 = vmatpush1.msra.mxu0 %v1251
  %1261 = vmatprep.subr.mxu0 %v1254
  %1262 = vmatpush1.msra.mxu0 %v1253
  %1263 = vmatprep.subr.mxu0 0.0
  %1264 = vmatpush1.msra.mxu0 0.0
  %1265 = vmatprep.subr.mxu0 0.0
  %1266 = vmatpush1.msra.mxu0 0.0
  %1267 = vmatprep.subr.mxu0 0.0
  %1268 = vmatpush1.msra.mxu0 0.0
  %1269 = vmatprep.subr.mxu0 0.0
  %1270 = vmatpush1.msra.mxu0 0.0
  %1271 = vmatprep.subr.mxu0 0.0
  %1272 = vmatpush1.msra.mxu0 0.0
  %1273 = vmatprep.subr.mxu0 0.0
  %1274 = vmatpush1.msra.mxu0 0.0
  %1275 = vmatprep.subr.mxu0 0.0
  %1276 = vmatpush1.msra.mxu0 0.0
  %1277 = vmatprep.subr.mxu0 0.0
  %1278 = vmatpush1.msra.mxu0 0.0
  %1279 = vmatprep.subr.mxu0 0.0
  %1280 = vmatpush1.msra.mxu0 0.0
  %1281 = vmatprep.subr.mxu0 0.0
  %1282 = vmatpush1.msra.mxu0 0.0
  %1283 = vmatprep.subr.mxu0 0.0
  %1284 = vmatpush1.msra.mxu0 0.0
  %1285 = vmatprep.subr.mxu0 0.0
  %1286 = vmatpush1.msra.mxu0 0.0
  %1287 = vmatprep.subr.mxu0 0.0
  %1288 = vmatpush1.msra.mxu0 0.0
  %1289 = vmatprep.subr.mxu0 0.0
  %1290 = vmatpush1.msra.mxu0 0.0
  %1291 = vmatprep.subr.mxu0 0.0
  %1292 = vmatpush1.msra.mxu0 0.0
  %1293 = vmatprep.subr.mxu0 0.0
  %1294 = vmatpush1.msra.mxu0 0.0
  %1295 = vmatprep.subr.mxu0 0.0
  %1296 = vmatpush1.msra.mxu0 0.0
  %1297 = vmatprep.subr.mxu0 0.0
  %1298 = vmatpush1.msra.mxu0 0.0
  %1299 = vmatprep.subr.mxu0 0.0
  %1300 = vmatpush1.msra.mxu0 0.0
  %1301 = vmatprep.subr.mxu0 0.0
  %1302 = vmatpush1.msra.mxu0 0.0
  %1303 = vmatprep.subr.mxu0 0.0
  %1304 = vmatpush1.msra.mxu0 0.0
  %1305 = vmatprep.subr.mxu0 0.0
  %1306 = vmatpush1.msra.mxu0 0.0
  %1307 = vmatprep.subr.mxu0 0.0
  %1308 = vmatpush1.msra.mxu0 0.0
  %1309 = vmatprep.subr.mxu0 0.0
  %1310 = vmatpush1.msra.mxu0 0.0
  %1311 = vmatprep.subr.mxu0 0.0
  %1312 = vmatpush1.msra.mxu0 0.0
  %1313 = vmatprep.subr.mxu0 0.0
  %1314 = vmatpush1.msra.mxu0 0.0
  %1315 = vmatprep.subr.mxu0 0.0
  %1316 = vmatpush1.msra.mxu0 0.0
  %1317 = vmatprep.subr.mxu0 0.0
  %1318 = vmatpush1.msra.mxu0 0.0
  %1319 = vmatprep.mubr.f32.mxu0 0.0
  %1320 = vmatmul.mubr.f32.gmra.mrb[0].mxu0 %v318
  %v1321 = vpop.f32.mrb[0].mxu0
  %v1322 = vadd.f32 %v314, %v1321
  %v1323 = vpop.f32.mrb[0].mxu0
  %v1324 = vadd.f32 %v314, %v1323
  %1325 = vdwg.mxu0
  %v1326 = vrot.slane %v1322, 4
  %v1327 = vmax.f32 %v1322, %v1326
  %v1328 = vrot.slane %v1327, 2
  %v1329 = vmax.f32 %v1327, %v1328
  %v1330 = vrot.slane %v1329, 1
  %v1331 = vmax.f32 %v1329, %v1330
  %v1332 = vrot.slane %v1324, 4
  %v1333 = vmax.f32 %v1324, %v1332
  %v1334 = vrot.slane %v1333, 2
  %v1335 = vmax.f32 %v1333, %v1334
  %v1336 = vrot.slane %v1335, 1
  %v1337 = vmax.f32 %v1335, %v1336
  %v1338 = vsub.f32 %v1322, %v1331
  %v1339 = vsub.f32 %v1324, %v1337
  %v1340 = vmul.f32 %v1338, 1.442695
  %v1341 = vpow.pop %v1340
  %v1342 = vmul.f32 %v1339, 1.442695
  %v1343 = vpow.pop %v1342
  %v1344 = vrot.slane %v1341, 4
  %v1345 = vadd.f32 %v1341, %v1344
  %v1346 = vrot.slane %v1345, 2
  %v1347 = vadd.f32 %v1345, %v1346
  %v1348 = vrot.slane %v1347, 1
  %v1349 = vadd.f32 %v1347, %v1348
  %v1350 = vrot.slane %v1343, 4
  %v1351 = vadd.f32 %v1343, %v1350
  %v1352 = vrot.slane %v1351, 2
  %v1353 = vadd.f32 %v1351, %v1352
  %v1354 = vrot.slane %v1353, 1
  %v1355 = vadd.f32 %v1353, %v1354
  %v1356 = vlog2.pop %v1349
  %v1357 = vmul.f32 %v1356, 0.6931472
  %v1358 = vlog2.pop %v1355
  %v1359 = vmul.f32 %v1358, 0.6931472
  %v1360 = vadd.f32 %v1331, %v1357
  %v1361 = vadd.f32 %v1337, %v1359
  %v1362 = vlaneseq
  %v1363 = vshrl.u32 %v1362, 7
  %v1364 = vsub.s32 3, %v1363
  %v1365 = vrot.slane %v838, %v1364
  %v1366 = vlaneseq
  %v1367 = vshrl.u32 %v1366, 7
  %v1368 = vsub.s32 7, %v1367
  %v1369 = vrot.slane %v838, %v1368
  %v1370 = vlaneseq
  %v1371 = vshrl.u32 %v1370, 7
  %v1372 = vsub.s32 3, %v1371
  %v1373 = vrot.slane %v1365, %v1372
  %v1374 = vlaneseq
  %v1375 = vshrl.u32 %v1374, 7
  %v1376 = vsub.s32 3, %v1375
  %v1377 = vrot.slane %v1369, %v1376
  %vm1378 = vcmp.eq.s32.totalorder %v428, %v1373
  %vm1379 = vcmp.eq.s32.totalorder %v428, %v1377
  %v1380 = vsel %vm1378, %v1322, 0.0
  %v1381 = vsel %vm1379, %v1324, 0.0
  %v1382 = vrot.slane %v1380, 4
  %v1383 = vadd.f32 %v1380, %v1382
  %v1384 = vrot.slane %v1383, 2
  %v1385 = vadd.f32 %v1383, %v1384
  %v1386 = vrot.slane %v1385, 1
  %v1387 = vadd.f32 %v1385, %v1386
  %v1388 = vrot.slane %v1381, 4
  %v1389 = vadd.f32 %v1381, %v1388
  %v1390 = vrot.slane %v1389, 2
  %v1391 = vadd.f32 %v1389, %v1390
  %v1392 = vrot.slane %v1391, 1
  %v1393 = vadd.f32 %v1391, %v1392
  %v1394 = vsub.f32 %v1360, %v1387
  %v1395 = vsub.f32 %v1361, %v1393
  %v1396 = vlaneseq
  %v1397 = vshrl.u32 %v1396, 7
  %v1398 = vsub.s32 3, %v1397
  %v1399 = vrot.slane %v1083, %v1398
  %v1400 = vlaneseq
  %v1401 = vshrl.u32 %v1400, 7
  %v1402 = vsub.s32 7, %v1401
  %v1403 = vrot.slane %v1083, %v1402
  %v1406 = vmul.f32 %v1394, %v1399
  %v1407 = vmul.f32 %v1395, %v1403
  %v1408 = vadd.f32 %v1099, %v1406
  %v1409 = vadd.f32 %v1100, %v1407
  %v1410 = vrot.slane %v1083, 7
  %v1411 = vrot.slane %v1410, 4
  %v1413 = vadd.f32 %v1104, %v1411
  %v1414 = vld [vmem:[%s7] sm:$0x3]
  %v1417 = vcombine.low %v1408, %v1409
  %v1419 = vunpack.c.l.s4 1966171168
  %v1420 = vunpack.c.0.s8 %v1419
  %v1421 = vlaneseq
  %v1422 = vshrl.u32 %v1421, 7
  %v1423 = vsub.s32 %v1420, %v1422
  %v1424 = vrot.slane %v1417, %v1423
  %v1426 = vunpack.c.l.s4 1966171168
  %v1427 = vunpack.c.0.s8 %v1426
  %v1428 = vlaneseq
  %v1429 = vshrl.u32 %v1428, 7
  %v1430 = vsub.s32 %v1427, %v1429
  %v1431 = vrot.slane %v1424, %v1430
  %v1433 = vadd.f32 %v1414, %v1431
  %v1434 = vlaneseq
  %vm1435 = vcmp.ge.s32.totalorder %v1434, 0
  %vm1436 = vcmp.lt.s32.totalorder %v1434, 256
  %vm1437 = vmand %vm1435, %vm1436
  %1438 = vst.msk [vmem:[%s7] sm:$0x3] %vm1437, %v1433
  %v1439 = vld [vmem:[%s8] sm:$0x3]
  %v1442 = vunpack.c.l.s4 1966171168
  %v1443 = vunpack.c.0.s8 %v1442
  %v1444 = vlaneseq
  %v1445 = vshrl.u32 %v1444, 7
  %v1446 = vsub.s32 %v1443, %v1445
  %v1447 = vrot.slane %v1413, %v1446
  %v1449 = vunpack.c.l.s4 1966171168
  %v1450 = vunpack.c.0.s8 %v1449
  %v1451 = vlaneseq
  %v1452 = vshrl.u32 %v1451, 7
  %v1453 = vsub.s32 %v1450, %v1452
  %v1454 = vrot.slane %v1447, %v1453
  %v1456 = vadd.f32 %v1439, %v1454
  %1457 = vst.msk [vmem:[%s8] sm:$0x3] %vm1437, %v1456
  // Predicated region
  $region34: #{forward_train.6} parent=0 // pred_check
    _
  $region35: #{forward_train.6} parent=0 // pred_check_branch
    %1459 = sbr.rel (0) target = $region37
  $region36: #{forward_train.6} parent=0 // pred_region
    _
  $region37: #{forward_train.6} parent=0 // pred_fallthru
    _
  // Predicated region
  $region38: #{forward_train.6} parent=0 // pred_check
    _
  $region39: #{forward_train.6} parent=0 // pred_check_branch
    %1461 = sbr.rel (0) target = $region41
  $region40: #{forward_train.6} parent=0 // pred_region
    _
  $region41: #{forward_train.6} parent=0 // pred_fallthru
    _
  // Predicated region
  $region42: #{forward_train.6} parent=0 // pred_check
    _
  $region43: #{forward_train.6} parent=0 // pred_check_branch
    %1463 = sbr.rel (0) target = $region45
  $region44: #{forward_train.6} parent=0 // pred_region
    _
  $region45: #{forward_train.6} parent=0 // pred_fallthru
    _
  // Predicated region
  $region46: #{forward_train.6} parent=0 // pred_check
    _
  $region47: #{forward_train.6} parent=0 // pred_check_branch
    %1465 = sbr.rel (0) target = $region49
  $region48: #{forward_train.6} parent=0 // pred_region
    _
  $region49: #{forward_train.6} parent=0 // pred_fallthru
    _

</llo_original>
